<compile_context>
chip_gen: v5e
topology: v5e:2x2
jax: 0.10.0
libtpu: 0.0.40
codegen_flags: <defaults>
</compile_context>

<pallas_src>
import functools

import jax
import jax.numpy as jnp
from jax.experimental import pallas as pl
from jax.experimental.pallas import tpu as pltpu

LEAKY_SLOPE = 0.2
BN_EPS = 1e-5
LANE = 128


def _round_up(x, m):
    return (x + m - 1) // m * m


# --------------------- Pass 1: conv matmul + partial batch statistics ---------------------


def stats_kernel(p_ref, w_ref, stats_ref):
    # p_ref: (TM, K_pad) bf16, w_ref: (K_pad, Cout_pad) bf16, stats_ref: (1, 8, Cout_pad) f32
    y = jnp.dot(p_ref[...], w_ref[...], preferred_element_type=jnp.float32)  # (TM, Cp) f32
    s = jnp.sum(y, axis=0, keepdims=True)        # (1, Cp)  per-channel sum
    sq = jnp.sum(y * y, axis=0, keepdims=True)   # (1, Cp)  per-channel sum of squares
    pad = jnp.zeros((6, s.shape[-1]), jnp.float32)
    stats_ref[...] = jnp.concatenate([s, sq, pad], axis=0)[None]  # rows 2..7 unused padding


# ------------------ Pass 2: conv matmul + folded BatchNorm + LeakyReLU --------------------


def norm_kernel(p_ref, w_ref, scale_ref, shift_ref, o_ref):
    # scale/shift: (1, Cout_pad) f32, already folded: scale = gamma*rsqrt(var+eps),
    # shift = beta - mean*scale.
    y = jnp.dot(p_ref[...], w_ref[...], preferred_element_type=jnp.float32)  # (TM, Cp) f32
    y = y * scale_ref[...] + shift_ref[...]
    o_ref[...] = jnp.where(y >= 0, y, LEAKY_SLOPE * y)


# ----------------------------------- host-side glue ---------------------------------------


def im2col(x, kernel_size, stride, padding):
    """x: (N, Cin, H, W) -> patches (N*OH*OW, Cin*KH*KW); K ordered cin-major, then kh, kw."""
    N, Cin, H, W = x.shape
    KH = KW = kernel_size
    OH = (H + 2 * padding - KH) // stride + 1
    OW = (W + 2 * padding - KW) // stride + 1
    xp = jnp.pad(x, ((0, 0), (0, 0), (padding, padding), (padding, padding)))
    slices = []
    for kh in range(KH):
        for kw in range(KW):
            sl = xp[:, :, kh:kh + (OH - 1) * stride + 1:stride,
                          kw:kw + (OW - 1) * stride + 1:stride]  # (N, Cin, OH, OW)
            slices.append(sl)
    patches = jnp.stack(slices, axis=2)                 # (N, Cin, KH*KW, OH, OW)
    patches = patches.transpose(0, 3, 4, 1, 2)          # (N, OH, OW, Cin, KH*KW)
    patches = patches.reshape(N * OH * OW, Cin * KH * KW)
    return patches, OH, OW


@functools.partial(jax.jit, static_argnames=("stride", "padding", "block_m"))
def basic_block_forward(x, conv_weight, bn_gamma, bn_beta, *, stride, padding, block_m=1024):
    """x: (N, Cin, H, W); conv_weight: (Cout, Cin, KH, KW). Returns (N, Cout, OH, OW)."""
    N, Cin, H, W = x.shape
    Cout, _, KH, KW = conv_weight.shape

    patches, OH, OW = im2col(x, KH, stride, padding)          # (M, K) f32
    M, K = patches.shape
    Kp = _round_up(K, LANE)                                   # lane-dense contraction
    Cp = _round_up(Cout, LANE)                                # lane-dense output channels
    tm = min(block_m, _round_up(M, 8))                        # M tile (multiple of 8 sublanes)
    Mp = _round_up(M, tm)
    num_tiles = Mp // tm

    # Zero-padded, bf16 matmul operands (f32 accumulation happens on the MXU).
    patches_p = jnp.zeros((Mp, Kp), jnp.bfloat16).at[:M, :K].set(patches.astype(jnp.bfloat16))
    w_p = jnp.zeros((Kp, Cp), jnp.bfloat16).at[:K, :Cout].set(
        conv_weight.reshape(Cout, K).T.astype(jnp.bfloat16))

    # ---- Pass 1: per-tile partial per-channel sum / sum-of-squares ----
    stats = pl.pallas_call(
        stats_kernel,
        out_shape=jax.ShapeDtypeStruct((num_tiles, 8, Cp), jnp.float32),
        grid=(num_tiles,),
        in_specs=[
            pl.BlockSpec((tm, Kp), lambda i: (i, 0)),
            pl.BlockSpec((Kp, Cp), lambda i: (0, 0)),
        ],
        out_specs=pl.BlockSpec((1, 8, Cp), lambda i: (i, 0, 0)),
        compiler_params=pltpu.CompilerParams(dimension_semantics=("parallel",)),
    )(patches_p, w_p)

    # ---- Finalize batch statistics (tiny, plain JAX). Padded rows/channels sum to 0. ----
    tot = jnp.sum(stats, axis=0)                              # (8, Cp)
    m_count = jnp.float32(M)                                  # real rows only
    mean = tot[0, :Cout] / m_count
    var = jnp.maximum(tot[1, :Cout] / m_count - mean * mean, 0.0)   # clamp E[x^2]-E[x]^2
    inv_std = jax.lax.rsqrt(var + BN_EPS)
    scale = bn_gamma.astype(jnp.float32) * inv_std
    shift = bn_beta.astype(jnp.float32) - mean * scale
    scale_p = jnp.zeros((1, Cp), jnp.float32).at[0, :Cout].set(scale)   # padded lanes -> 0
    shift_p = jnp.zeros((1, Cp), jnp.float32).at[0, :Cout].set(shift)

    # ---- Pass 2: recompute conv tile, fold BN affine, LeakyReLU, lane-dense store ----
    out_p = pl.pallas_call(
        norm_kernel,
        out_shape=jax.ShapeDtypeStruct((Mp, Cp), jnp.float32),
        grid=(num_tiles,),
        in_specs=[
            pl.BlockSpec((tm, Kp), lambda i: (i, 0)),
            pl.BlockSpec((Kp, Cp), lambda i: (0, 0)),
            pl.BlockSpec((1, Cp), lambda i: (0, 0)),
            pl.BlockSpec((1, Cp), lambda i: (0, 0)),
        ],
        out_specs=pl.BlockSpec((tm, Cp), lambda i: (i, 0)),
        compiler_params=pltpu.CompilerParams(dimension_semantics=("parallel",)),
    )(patches_p, w_p, scale_p, shift_p)

    # Strip padding, back to NCHW (layout glue left to XLA / the consumer).
    return out_p[:M, :Cout].reshape(N, OH, OW, Cout).transpose(0, 3, 1, 2)


def reference_forward(x, conv_weight, bn_gamma, bn_beta, *, stride, padding):
    """Pure-JAX reference mirroring PyTorch Conv2d + BatchNorm2d(train) + LeakyReLU(0.2).
    The conv inputs are cast to bf16 (f32 accumulation) to match the kernel's MXU dtype."""
    y = jax.lax.conv_general_dilated(
        x.astype(jnp.bfloat16), conv_weight.astype(jnp.bfloat16),
        window_strides=(stride, stride),
        padding=[(padding, padding), (padding, padding)],
        dimension_numbers=("NCHW", "OIHW", "NCHW"),
        preferred_element_type=jnp.float32)
    mean = jnp.mean(y, axis=(0, 2, 3), keepdims=True)
    var = jnp.mean((y - mean) ** 2, axis=(0, 2, 3), keepdims=True)
    y = (y - mean) * jax.lax.rsqrt(var + BN_EPS)
    y = y * bn_gamma.reshape(1, -1, 1, 1) + bn_beta.reshape(1, -1, 1, 1)
    return jnp.where(y >= 0, y, LEAKY_SLOPE * y)


if __name__ == "__main__":
    # BasicBlock(in_planes=4, out_planes=8, kernel_size=3, stride=1, padding=1),
    # input NCHW (2, 4, 16, 16).
    N, Cin, H, W = 2, 4, 16, 16
    Cout, Ksz, S, P = 8, 3, 1, 1

    key = jax.random.PRNGKey(0)
    kx, kw = jax.random.split(key)
    x = jax.random.normal(kx, (N, Cin, H, W), dtype=jnp.float32)
    conv_weight = jax.random.normal(kw, (Cout, Cin, Ksz, Ksz), dtype=jnp.float32) * 0.1
    bn_gamma = jnp.ones((Cout,), dtype=jnp.float32)   # nn.BatchNorm2d default weight
    bn_beta = jnp.zeros((Cout,), dtype=jnp.float32)   # nn.BatchNorm2d default bias

    out = basic_block_forward(x, conv_weight, bn_gamma, bn_beta, stride=S, padding=P)
    out = jax.block_until_ready(out)

    ref = reference_forward(x, conv_weight, bn_gamma, bn_beta, stride=S, padding=P)
    assert out.shape == (N, Cout, H, W)
    assert jnp.allclose(out, ref, atol=1e-3, rtol=1e-3), "mismatch vs reference"

    print("KERNEL_OK")
</pallas_src>

<mosaic_0001>
module attributes {stable_mosaic.version = 11 : i64} {
  func.func @norm_kernel(%arg0: i32, %arg1: memref<512x128xbf16, #tpu.memory_space<vmem>>, %arg2: memref<128x128xbf16, #tpu.memory_space<vmem>>, %arg3: memref<1x128xf32, #tpu.memory_space<vmem>>, %arg4: memref<1x128xf32, #tpu.memory_space<vmem>>, %arg5: memref<512x128xf32, #tpu.memory_space<vmem>>) attributes {dimension_semantics = [#tpu.dimension_semantics<parallel>], iteration_bounds = array<i64: 1>, scalar_prefetch = 0 : i64, scratch_operands = 0 : i64, tpu.core_type = #tpu.core_type<tc>, window_params = [{transform_indices = @transform_0, window_bounds = array<i64: 512, 128>}, {pipeline_mode = #tpu.pipeline_mode<synchronous>, transform_indices = @transform_1, window_bounds = array<i64: 128, 128>}, {pipeline_mode = #tpu.pipeline_mode<synchronous>, transform_indices = @transform_2, window_bounds = array<i64: 1, 128>}, {pipeline_mode = #tpu.pipeline_mode<synchronous>, transform_indices = @transform_3, window_bounds = array<i64: 1, 128>}, {transform_indices = @transform_4, window_bounds = array<i64: 512, 128>}]} {
    %c0 = arith.constant 0 : index
    %c0_0 = arith.constant 0 : index
    %0 = vector.load %arg1[%c0, %c0_0] : memref<512x128xbf16, #tpu.memory_space<vmem>>, vector<512x128xbf16>
    %c0_1 = arith.constant 0 : index
    %c0_2 = arith.constant 0 : index
    %1 = vector.load %arg2[%c0_1, %c0_2] : memref<128x128xbf16, #tpu.memory_space<vmem>>, vector<128x128xbf16>
    %cst = arith.constant dense<0.000000e+00> : vector<512x128xf32>
    %2 = tpu.matmul %0, %1, %cst {dimension_numbers = #tpu.dot_dimension_numbers<[1], [0], [0], [1], [0, 0, 1, 1], [], []>} : vector<512x128xbf16>, vector<128x128xbf16>, vector<512x128xf32> -> vector<512x128xf32>
    %c0_3 = arith.constant 0 : index
    %c0_4 = arith.constant 0 : index
    %3 = vector.load %arg3[%c0_3, %c0_4] : memref<1x128xf32, #tpu.memory_space<vmem>>, vector<1x128xf32>
    %4 = vector.broadcast %3 : vector<1x128xf32> to vector<512x128xf32>
    %5 = arith.mulf %2, %4 : vector<512x128xf32>
    %c0_5 = arith.constant 0 : index
    %c0_6 = arith.constant 0 : index
    %6 = vector.load %arg4[%c0_5, %c0_6] : memref<1x128xf32, #tpu.memory_space<vmem>>, vector<1x128xf32>
    %7 = vector.broadcast %6 : vector<1x128xf32> to vector<512x128xf32>
    %8 = arith.addf %5, %7 : vector<512x128xf32>
    %cst_7 = arith.constant 0.000000e+00 : f32
    %9 = vector.broadcast %cst_7 : f32 to vector<512x128xf32>
    %10 = arith.cmpf oge, %8, %9 : vector<512x128xf32>
    %cst_8 = arith.constant 2.000000e-01 : f32
    %11 = vector.broadcast %cst_8 : f32 to vector<512x128xf32>
    %12 = arith.mulf %11, %8 : vector<512x128xf32>
    %13 = arith.select %10, %8, %12 : vector<512x128xi1>, vector<512x128xf32>
    %c0_9 = arith.constant 0 : index
    %c0_10 = arith.constant 0 : index
    %14 = vector.load %arg5[%c0_9, %c0_10] : memref<512x128xf32, #tpu.memory_space<vmem>>, vector<512x128xf32>
    tpu.vector_store %arg5[%c0_9, %c0_10], %13 {strides = array<i32>} : memref<512x128xf32, #tpu.memory_space<vmem>>, vector<512x128xf32>,
    return
  }
  func.func @transform_0(%arg0: i32) -> (i32, i32) {
    %c0_i32 = arith.constant 0 : i32
    %c0_i32_0 = arith.constant 0 : i32
    return %arg0, %c0_i32 : i32, i32
  }
  func.func @transform_1(%arg0: i32) -> (i32, i32) {
    %c0_i32 = arith.constant 0 : i32
    %c0_i32_0 = arith.constant 0 : i32
    %c0_i32_1 = arith.constant 0 : i32
    return %c0_i32, %c0_i32_0 : i32, i32
  }
  func.func @transform_2(%arg0: i32) -> (i32, i32) {
    %c0_i32 = arith.constant 0 : i32
    %c0_i32_0 = arith.constant 0 : i32
    %c0_i32_1 = arith.constant 0 : i32
    return %c0_i32, %c0_i32_0 : i32, i32
  }
  func.func @transform_3(%arg0: i32) -> (i32, i32) {
    %c0_i32 = arith.constant 0 : i32
    %c0_i32_0 = arith.constant 0 : i32
    %c0_i32_1 = arith.constant 0 : i32
    return %c0_i32, %c0_i32_0 : i32, i32
  }
  func.func @transform_4(%arg0: i32) -> (i32, i32) {
    %c0_i32 = arith.constant 0 : i32
    %c0_i32_0 = arith.constant 0 : i32
    return %arg0, %c0_i32 : i32, i32
  }
}

module attributes {stable_mosaic.version = 11 : i64} {
  func.func @stats_kernel(%arg0: i32, %arg1: memref<512x128xbf16, #tpu.memory_space<vmem>>, %arg2: memref<128x128xbf16, #tpu.memory_space<vmem>>, %arg3: memref<1x8x128xf32, #tpu.memory_space<vmem>>) attributes {dimension_semantics = [#tpu.dimension_semantics<parallel>], iteration_bounds = array<i64: 1>, scalar_prefetch = 0 : i64, scratch_operands = 0 : i64, tpu.core_type = #tpu.core_type<tc>, window_params = [{transform_indices = @transform_0, window_bounds = array<i64: 512, 128>}, {pipeline_mode = #tpu.pipeline_mode<synchronous>, transform_indices = @transform_1, window_bounds = array<i64: 128, 128>}, {transform_indices = @transform_2, window_bounds = array<i64: 1, 8, 128>}]} {
    %c0 = arith.constant 0 : index
    %c0_0 = arith.constant 0 : index
    %0 = vector.load %arg1[%c0, %c0_0] : memref<512x128xbf16, #tpu.memory_space<vmem>>, vector<512x128xbf16>
    %c0_1 = arith.constant 0 : index
    %c0_2 = arith.constant 0 : index
    %1 = vector.load %arg2[%c0_1, %c0_2] : memref<128x128xbf16, #tpu.memory_space<vmem>>, vector<128x128xbf16>
    %cst = arith.constant dense<0.000000e+00> : vector<512x128xf32>
    %2 = tpu.matmul %0, %1, %cst {dimension_numbers = #tpu.dot_dimension_numbers<[1], [0], [0], [1], [0, 0, 1, 1], [], []>} : vector<512x128xbf16>, vector<128x128xbf16>, vector<512x128xf32> -> vector<512x128xf32>
    %cst_3 = arith.constant dense<0.000000e+00> : vector<128xf32>
    %3 = vector.multi_reduction <add>, %2, %cst_3 [0] : vector<512x128xf32> to vector<128xf32>
    %4 = vector.shape_cast %3 : vector<128xf32> to vector<1x128xf32>
    %5 = arith.mulf %2, %2 : vector<512x128xf32>
    %cst_4 = arith.constant dense<0.000000e+00> : vector<128xf32>
    %6 = vector.multi_reduction <add>, %5, %cst_4 [0] : vector<512x128xf32> to vector<128xf32>
    %7 = vector.shape_cast %6 : vector<128xf32> to vector<1x128xf32>
    %cst_5 = arith.constant 0.000000e+00 : f32
    %8 = vector.broadcast %cst_5 : f32 to vector<6x128xf32>
    %9 = tpu.concatenate %4, %7, %8 in 0 : vector<1x128xf32>, vector<1x128xf32>, vector<6x128xf32> -> vector<8x128xf32>
    %10 = vector.shape_cast %9 : vector<8x128xf32> to vector<1x8x128xf32>
    %c0_6 = arith.constant 0 : index
    %c0_7 = arith.constant 0 : index
    %c0_8 = arith.constant 0 : index
    %11 = vector.load %arg3[%c0_6, %c0_7, %c0_8] : memref<1x8x128xf32, #tpu.memory_space<vmem>>, vector<1x8x128xf32>
    tpu.vector_store %arg3[%c0_6, %c0_7, %c0_8], %10 {strides = array<i32>} : memref<1x8x128xf32, #tpu.memory_space<vmem>>, vector<1x8x128xf32>,
    return
  }
  func.func @transform_0(%arg0: i32) -> (i32, i32) {
    %c0_i32 = arith.constant 0 : i32
    %c0_i32_0 = arith.constant 0 : i32
    return %arg0, %c0_i32 : i32, i32
  }
  func.func @transform_1(%arg0: i32) -> (i32, i32) {
    %c0_i32 = arith.constant 0 : i32
    %c0_i32_0 = arith.constant 0 : i32
    %c0_i32_1 = arith.constant 0 : i32
    return %c0_i32, %c0_i32_0 : i32, i32
  }
  func.func @transform_2(%arg0: i32) -> (i32, i32, i32) {
    %c0_i32 = arith.constant 0 : i32
    %c0_i32_0 = arith.constant 0 : i32
    %c0_i32_1 = arith.constant 0 : i32
    return %arg0, %c0_i32, %c0_i32_0 : i32, i32, i32
  }
}

</mosaic_0001>

<llo_original>
// kernel: basic_block_forward.2
$region0: #{basic_block_forward.2}
  #allocation0 [shape = 'u32[]', space=smem, size = 0x4, offset = 0x4, fixed_abs, tag = 'smem constant byte address 0x4 - core index']
  #allocation1 [shape = 'u32[72,128]{1,0:T(1,128)}', space=vmem, size = 0x9000, scoped, tag = 'internal scratch']
  %s0 = inlined_call_operand.vmem [shape: bf16[512,128], index: 0, kind: input, shape index: {}]
  %s1 = inlined_call_operand.vmem [shape: bf16[128,128], index: 1, kind: input, shape index: {}]
  %s2 = inlined_call_operand.vmem [shape: f32[1,8,128], index: 2, kind: output, shape index: {}]
  %s3 = sld [smem:[#allocation0]]
  $region18: #{basic_block_forward.2} parent=0
    _
  %s5 = ssub.s32 1, %s3
  %s6 = scalar_select 0, %s5, %s3
  // Predicated region
  $region2: #{basic_block_forward.2} parent=0 // pred_check
    _
  $region3: #{basic_block_forward.2} parent=0 // pred_check_branch
    %8 = sbr.rel (0) target = $region5
  $region4: #{basic_block_forward.2} parent=0 // pred_region
    _
  $region5: #{basic_block_forward.2} parent=0 // pred_fallthru
    _
  // Predicated region
  $region6: #{basic_block_forward.2} parent=0 // pred_check
    _
  $region7: #{basic_block_forward.2} parent=0 // pred_check_branch
    %10 = sbr.rel (0) target = $region9
  $region8: #{basic_block_forward.2} parent=0 // pred_region
    _
  $region9: #{basic_block_forward.2} parent=0 // pred_fallthru
    _
  %v11 = vld [vmem:[%s0] sm:$0xf]
  %v12 = vld [vmem:[%s0 + $0x4] sm:$0xf]
  %v13 = vld [vmem:[%s0 + $0x8] sm:$0xf]
  %v14 = vld [vmem:[%s0 + $0xc] sm:$0xf]
  %v15 = vld [vmem:[%s0 + $0x10] sm:$0xf]
  %v16 = vld [vmem:[%s0 + $0x14] sm:$0xf]
  %v17 = vld [vmem:[%s0 + $0x18] sm:$0xf]
  %v18 = vld [vmem:[%s0 + $0x1c] sm:$0xf]
  %v19 = vld [vmem:[%s0 + $0x20] sm:$0xf]
  %v20 = vld [vmem:[%s0 + $0x24] sm:$0xf]
  %v21 = vld [vmem:[%s0 + $0x28] sm:$0xf]
  %v22 = vld [vmem:[%s0 + $0x2c] sm:$0xf]
  %v23 = vld [vmem:[%s0 + $0x30] sm:$0xf]
  %v24 = vld [vmem:[%s0 + $0x34] sm:$0xf]
  %v25 = vld [vmem:[%s0 + $0x38] sm:$0xf]
  %v26 = vld [vmem:[%s0 + $0x3c] sm:$0xf]
  %v27 = vld [vmem:[%s0 + $0x40] sm:$0xf]
  %v28 = vld [vmem:[%s0 + $0x44] sm:$0xf]
  %v29 = vld [vmem:[%s0 + $0x48] sm:$0xf]
  %v30 = vld [vmem:[%s0 + $0x4c] sm:$0xf]
  %v31 = vld [vmem:[%s0 + $0x50] sm:$0xf]
  %v32 = vld [vmem:[%s0 + $0x54] sm:$0xf]
  %v33 = vld [vmem:[%s0 + $0x58] sm:$0xf]
  %v34 = vld [vmem:[%s0 + $0x5c] sm:$0xf]
  %v35 = vld [vmem:[%s0 + $0x60] sm:$0xf]
  %v36 = vld [vmem:[%s0 + $0x64] sm:$0xf]
  %v37 = vld [vmem:[%s0 + $0x68] sm:$0xf]
  %v38 = vld [vmem:[%s0 + $0x6c] sm:$0xf]
  %v39 = vld [vmem:[%s0 + $0x70] sm:$0xf]
  %v40 = vld [vmem:[%s0 + $0x74] sm:$0xf]
  %v41 = vld [vmem:[%s0 + $0x78] sm:$0xf]
  %v42 = vld [vmem:[%s0 + $0x7c] sm:$0xf]
  %v43 = vld [vmem:[%s0 + $0x80] sm:$0xf]
  %v44 = vld [vmem:[%s0 + $0x84] sm:$0xf]
  %v45 = vld [vmem:[%s0 + $0x88] sm:$0xf]
  %v46 = vld [vmem:[%s0 + $0x8c] sm:$0xf]
  %v47 = vld [vmem:[%s0 + $0x90] sm:$0xf]
  %v48 = vld [vmem:[%s0 + $0x94] sm:$0xf]
  %v49 = vld [vmem:[%s0 + $0x98] sm:$0xf]
  %v50 = vld [vmem:[%s0 + $0x9c] sm:$0xf]
  %v51 = vld [vmem:[%s0 + $0xa0] sm:$0xf]
  %v52 = vld [vmem:[%s0 + $0xa4] sm:$0xf]
  %v53 = vld [vmem:[%s0 + $0xa8] sm:$0xf]
  %v54 = vld [vmem:[%s0 + $0xac] sm:$0xf]
  %v55 = vld [vmem:[%s0 + $0xb0] sm:$0xf]
  %v56 = vld [vmem:[%s0 + $0xb4] sm:$0xf]
  %v57 = vld [vmem:[%s0 + $0xb8] sm:$0xf]
  %v58 = vld [vmem:[%s0 + $0xbc] sm:$0xf]
  %v59 = vld [vmem:[%s0 + $0xc0] sm:$0xf]
  %v60 = vld [vmem:[%s0 + $0xc4] sm:$0xf]
  %v61 = vld [vmem:[%s0 + $0xc8] sm:$0xf]
  %v62 = vld [vmem:[%s0 + $0xcc] sm:$0xf]
  %v63 = vld [vmem:[%s0 + $0xd0] sm:$0xf]
  %v64 = vld [vmem:[%s0 + $0xd4] sm:$0xf]
  %v65 = vld [vmem:[%s0 + $0xd8] sm:$0xf]
  %v66 = vld [vmem:[%s0 + $0xdc] sm:$0xf]
  %v67 = vld [vmem:[%s0 + $0xe0] sm:$0xf]
  %v68 = vld [vmem:[%s0 + $0xe4] sm:$0xf]
  %v69 = vld [vmem:[%s0 + $0xe8] sm:$0xf]
  %v70 = vld [vmem:[%s0 + $0xec] sm:$0xf]
  %v71 = vld [vmem:[%s0 + $0xf0] sm:$0xf]
  %v72 = vld [vmem:[%s0 + $0xf4] sm:$0xf]
  %v73 = vld [vmem:[%s0 + $0xf8] sm:$0xf]
  %v74 = vld [vmem:[%s0 + $0xfc] sm:$0xf]
  %v75 = vld [vmem:[%s1] sm:$0xf]
  %v76 = vld [vmem:[%s1 + $0x4] sm:$0xf]
  %v77 = vld [vmem:[%s1 + $0x8] sm:$0xf]
  %v78 = vld [vmem:[%s1 + $0xc] sm:$0xf]
  %v79 = vld [vmem:[%s1 + $0x10] sm:$0xf]
  %v80 = vld [vmem:[%s1 + $0x14] sm:$0xf]
  %v81 = vld [vmem:[%s1 + $0x18] sm:$0xf]
  %v82 = vld [vmem:[%s1 + $0x1c] sm:$0xf]
  %v83 = vld [vmem:[%s1 + $0x20] sm:$0xf]
  %v84 = vld [vmem:[%s1 + $0x24] sm:$0xf]
  %v85 = vld [vmem:[%s1 + $0x28] sm:$0xf]
  %v86 = vld [vmem:[%s1 + $0x2c] sm:$0xf]
  %v87 = vld [vmem:[%s1 + $0x30] sm:$0xf]
  %v88 = vld [vmem:[%s1 + $0x34] sm:$0xf]
  %v89 = vld [vmem:[%s1 + $0x38] sm:$0xf]
  %v90 = vld [vmem:[%s1 + $0x3c] sm:$0xf]
  %v155 = vunpack.c.l.b16 %v11
  %v156 = vunpack.c.l.b16 %v12
  %v157 = vunpack.c.l.b16 %v13
  %v158 = vunpack.c.l.b16 %v14
  %v159 = vunpack.c.l.b16 %v15
  %v160 = vunpack.c.l.b16 %v16
  %v161 = vunpack.c.l.b16 %v17
  %v162 = vunpack.c.l.b16 %v18
  %v163 = vunpack.c.l.b16 %v19
  %v164 = vunpack.c.l.b16 %v20
  %v165 = vunpack.c.l.b16 %v21
  %v166 = vunpack.c.l.b16 %v22
  %v167 = vunpack.c.l.b16 %v23
  %v168 = vunpack.c.l.b16 %v24
  %v169 = vunpack.c.l.b16 %v25
  %v170 = vunpack.c.l.b16 %v26
  %v171 = vunpack.c.l.b16 %v27
  %v172 = vunpack.c.l.b16 %v28
  %v173 = vunpack.c.l.b16 %v29
  %v174 = vunpack.c.l.b16 %v30
  %v175 = vunpack.c.l.b16 %v31
  %v176 = vunpack.c.l.b16 %v32
  %v177 = vunpack.c.l.b16 %v33
  %v178 = vunpack.c.l.b16 %v34
  %v179 = vunpack.c.l.b16 %v35
  %v180 = vunpack.c.l.b16 %v36
  %v181 = vunpack.c.l.b16 %v37
  %v182 = vunpack.c.l.b16 %v38
  %v183 = vunpack.c.l.b16 %v39
  %v184 = vunpack.c.l.b16 %v40
  %v185 = vunpack.c.l.b16 %v41
  %v186 = vunpack.c.l.b16 %v42
  %v187 = vunpack.c.l.b16 %v43
  %v188 = vunpack.c.l.b16 %v44
  %v189 = vunpack.c.l.b16 %v45
  %v190 = vunpack.c.l.b16 %v46
  %v191 = vunpack.c.l.b16 %v47
  %v192 = vunpack.c.l.b16 %v48
  %v193 = vunpack.c.l.b16 %v49
  %v194 = vunpack.c.l.b16 %v50
  %v195 = vunpack.c.l.b16 %v51
  %v196 = vunpack.c.l.b16 %v52
  %v197 = vunpack.c.l.b16 %v53
  %v198 = vunpack.c.l.b16 %v54
  %v199 = vunpack.c.l.b16 %v55
  %v200 = vunpack.c.l.b16 %v56
  %v201 = vunpack.c.l.b16 %v57
  %v202 = vunpack.c.l.b16 %v58
  %v203 = vunpack.c.l.b16 %v59
  %v204 = vunpack.c.l.b16 %v60
  %v205 = vunpack.c.l.b16 %v61
  %v206 = vunpack.c.l.b16 %v62
  %v207 = vunpack.c.l.b16 %v63
  %v208 = vunpack.c.l.b16 %v64
  %v209 = vunpack.c.l.b16 %v65
  %v210 = vunpack.c.l.b16 %v66
  %v211 = vunpack.c.l.b16 %v67
  %v212 = vunpack.c.l.b16 %v68
  %v213 = vunpack.c.l.b16 %v69
  %v214 = vunpack.c.l.b16 %v70
  %v215 = vunpack.c.l.b16 %v71
  %v216 = vunpack.c.l.b16 %v72
  %v217 = vunpack.c.l.b16 %v73
  %v218 = vunpack.c.l.b16 %v74
  %v219 = vpack.c.b16 %v156, %v155
  %v220 = vpack.c.b16 %v158, %v157
  %v221 = vpack.c.b16 %v160, %v159
  %v222 = vpack.c.b16 %v162, %v161
  %v223 = vpack.c.b16 %v164, %v163
  %v224 = vpack.c.b16 %v166, %v165
  %v225 = vpack.c.b16 %v168, %v167
  %v226 = vpack.c.b16 %v170, %v169
  %v227 = vpack.c.b16 %v172, %v171
  %v228 = vpack.c.b16 %v174, %v173
  %v229 = vpack.c.b16 %v176, %v175
  %v230 = vpack.c.b16 %v178, %v177
  %v231 = vpack.c.b16 %v180, %v179
  %v232 = vpack.c.b16 %v182, %v181
  %v233 = vpack.c.b16 %v184, %v183
  %v234 = vpack.c.b16 %v186, %v185
  %v235 = vpack.c.b16 %v188, %v187
  %v236 = vpack.c.b16 %v190, %v189
  %v237 = vpack.c.b16 %v192, %v191
  %v238 = vpack.c.b16 %v194, %v193
  %v239 = vpack.c.b16 %v196, %v195
  %v240 = vpack.c.b16 %v198, %v197
  %v241 = vpack.c.b16 %v200, %v199
  %v242 = vpack.c.b16 %v202, %v201
  %v243 = vpack.c.b16 %v204, %v203
  %v244 = vpack.c.b16 %v206, %v205
  %v245 = vpack.c.b16 %v208, %v207
  %v246 = vpack.c.b16 %v210, %v209
  %v247 = vpack.c.b16 %v212, %v211
  %v248 = vpack.c.b16 %v214, %v213
  %v249 = vpack.c.b16 %v216, %v215
  %v250 = vpack.c.b16 %v218, %v217
  %v299 = vunpack.c.l.b16 %v75
  %v300 = vunpack.c.l.b16 %v76
  %v301 = vunpack.c.l.b16 %v77
  %v302 = vunpack.c.l.b16 %v78
  %v303 = vunpack.c.l.b16 %v79
  %v304 = vunpack.c.l.b16 %v80
  %v305 = vunpack.c.l.b16 %v81
  %v306 = vunpack.c.l.b16 %v82
  %v307 = vunpack.c.l.b16 %v83
  %v308 = vunpack.c.l.b16 %v84
  %v309 = vunpack.c.l.b16 %v85
  %v310 = vunpack.c.l.b16 %v86
  %v311 = vunpack.c.l.b16 %v87
  %v312 = vunpack.c.l.b16 %v88
  %v313 = vunpack.c.l.b16 %v89
  %v314 = vunpack.c.l.b16 %v90
  %v315 = vpack.c.b16 %v300, %v299
  %v316 = vpack.c.b16 %v302, %v301
  %v317 = vpack.c.b16 %v304, %v303
  %v318 = vpack.c.b16 %v306, %v305
  %v319 = vpack.c.b16 %v308, %v307
  %v320 = vpack.c.b16 %v310, %v309
  %v321 = vpack.c.b16 %v312, %v311
  %v322 = vpack.c.b16 %v314, %v313
  %331 = vmatpush.bf16.msra.mxu0 %v322
  %332 = vmatpush.bf16.msra.mxu0 %v321
  %333 = vmatpush.bf16.msra.mxu0 %v320
  %334 = vmatpush.bf16.msra.mxu0 %v319
  %335 = vmatpush.bf16.msra.mxu0 %v318
  %336 = vmatpush.bf16.msra.mxu0 %v317
  %337 = vmatpush.bf16.msra.mxu0 %v316
  %338 = vmatpush.bf16.msra.mxu0 %v315
  %339 = vmatmul.bf16.gmra.mxu0 %v219
  %v340 = vpop.f32.mrf.mxu0
  %v341 = vadd.f32 0.0, %v340
  %v342 = vpop.f32.mrf.mxu0
  %v343 = vadd.f32 0.0, %v342
  %344 = vmatmul.bf16.gmra.mxu0 %v220
  %v345 = vpop.f32.mrf.mxu0
  %v346 = vadd.f32 0.0, %v345
  %v347 = vpop.f32.mrf.mxu0
  %v348 = vadd.f32 0.0, %v347
  %349 = vmatmul.bf16.gmra.mxu0 %v221
  %v350 = vpop.f32.mrf.mxu0
  %v351 = vadd.f32 0.0, %v350
  %v352 = vpop.f32.mrf.mxu0
  %v353 = vadd.f32 0.0, %v352
  %354 = vmatmul.bf16.gmra.mxu0 %v222
  %v355 = vpop.f32.mrf.mxu0
  %v356 = vadd.f32 0.0, %v355
  %v357 = vpop.f32.mrf.mxu0
  %v358 = vadd.f32 0.0, %v357
  %359 = vmatmul.bf16.gmra.mxu0 %v223
  %v360 = vpop.f32.mrf.mxu0
  %v361 = vadd.f32 0.0, %v360
  %v362 = vpop.f32.mrf.mxu0
  %v363 = vadd.f32 0.0, %v362
  %364 = vmatmul.bf16.gmra.mxu0 %v224
  %v365 = vpop.f32.mrf.mxu0
  %v366 = vadd.f32 0.0, %v365
  %v367 = vpop.f32.mrf.mxu0
  %v368 = vadd.f32 0.0, %v367
  %369 = vmatmul.bf16.gmra.mxu0 %v225
  %v370 = vpop.f32.mrf.mxu0
  %v371 = vadd.f32 0.0, %v370
  %v372 = vpop.f32.mrf.mxu0
  %v373 = vadd.f32 0.0, %v372
  %374 = vmatmul.bf16.gmra.mxu0 %v226
  %v375 = vpop.f32.mrf.mxu0
  %v376 = vadd.f32 0.0, %v375
  %v377 = vpop.f32.mrf.mxu0
  %v378 = vadd.f32 0.0, %v377
  %379 = vmatmul.bf16.gmra.mxu0 %v227
  %v380 = vpop.f32.mrf.mxu0
  %v381 = vadd.f32 0.0, %v380
  %v382 = vpop.f32.mrf.mxu0
  %v383 = vadd.f32 0.0, %v382
  %384 = vmatmul.bf16.gmra.mxu0 %v228
  %v385 = vpop.f32.mrf.mxu0
  %v386 = vadd.f32 0.0, %v385
  %v387 = vpop.f32.mrf.mxu0
  %v388 = vadd.f32 0.0, %v387
  %389 = vmatmul.bf16.gmra.mxu0 %v229
  %v390 = vpop.f32.mrf.mxu0
  %v391 = vadd.f32 0.0, %v390
  %v392 = vpop.f32.mrf.mxu0
  %v393 = vadd.f32 0.0, %v392
  %394 = vmatmul.bf16.gmra.mxu0 %v230
  %v395 = vpop.f32.mrf.mxu0
  %v396 = vadd.f32 0.0, %v395
  %v397 = vpop.f32.mrf.mxu0
  %v398 = vadd.f32 0.0, %v397
  %399 = vmatmul.bf16.gmra.mxu0 %v231
  %v400 = vpop.f32.mrf.mxu0
  %v401 = vadd.f32 0.0, %v400
  %v402 = vpop.f32.mrf.mxu0
  %v403 = vadd.f32 0.0, %v402
  %404 = vmatmul.bf16.gmra.mxu0 %v232
  %v405 = vpop.f32.mrf.mxu0
  %v406 = vadd.f32 0.0, %v405
  %v407 = vpop.f32.mrf.mxu0
  %v408 = vadd.f32 0.0, %v407
  %409 = vmatmul.bf16.gmra.mxu0 %v233
  %v410 = vpop.f32.mrf.mxu0
  %v411 = vadd.f32 0.0, %v410
  %v412 = vpop.f32.mrf.mxu0
  %v413 = vadd.f32 0.0, %v412
  %414 = vmatmul.bf16.gmra.mxu0 %v234
  %v415 = vpop.f32.mrf.mxu0
  %v416 = vadd.f32 0.0, %v415
  %v417 = vpop.f32.mrf.mxu0
  %v418 = vadd.f32 0.0, %v417
  %419 = vmatmul.bf16.gmra.mxu0 %v235
  %v420 = vpop.f32.mrf.mxu0
  %v421 = vadd.f32 0.0, %v420
  %v422 = vpop.f32.mrf.mxu0
  %v423 = vadd.f32 0.0, %v422
  %424 = vmatmul.bf16.gmra.mxu0 %v236
  %v425 = vpop.f32.mrf.mxu0
  %v426 = vadd.f32 0.0, %v425
  %v427 = vpop.f32.mrf.mxu0
  %v428 = vadd.f32 0.0, %v427
  %429 = vmatmul.bf16.gmra.mxu0 %v237
  %v430 = vpop.f32.mrf.mxu0
  %v431 = vadd.f32 0.0, %v430
  %v432 = vpop.f32.mrf.mxu0
  %v433 = vadd.f32 0.0, %v432
  %434 = vmatmul.bf16.gmra.mxu0 %v238
  %v435 = vpop.f32.mrf.mxu0
  %v436 = vadd.f32 0.0, %v435
  %v437 = vpop.f32.mrf.mxu0
  %v438 = vadd.f32 0.0, %v437
  %439 = vmatmul.bf16.gmra.mxu0 %v239
  %v440 = vpop.f32.mrf.mxu0
  %v441 = vadd.f32 0.0, %v440
  %v442 = vpop.f32.mrf.mxu0
  %v443 = vadd.f32 0.0, %v442
  %444 = vmatmul.bf16.gmra.mxu0 %v240
  %v445 = vpop.f32.mrf.mxu0
  %v446 = vadd.f32 0.0, %v445
  %v447 = vpop.f32.mrf.mxu0
  %v448 = vadd.f32 0.0, %v447
  %449 = vmatmul.bf16.gmra.mxu0 %v241
  %v450 = vpop.f32.mrf.mxu0
  %v451 = vadd.f32 0.0, %v450
  %v452 = vpop.f32.mrf.mxu0
  %v453 = vadd.f32 0.0, %v452
  %454 = vmatmul.bf16.gmra.mxu0 %v242
  %v455 = vpop.f32.mrf.mxu0
  %v456 = vadd.f32 0.0, %v455
  %v457 = vpop.f32.mrf.mxu0
  %v458 = vadd.f32 0.0, %v457
  %459 = vmatmul.bf16.gmra.mxu0 %v243
  %v460 = vpop.f32.mrf.mxu0
  %v461 = vadd.f32 0.0, %v460
  %v462 = vpop.f32.mrf.mxu0
  %v463 = vadd.f32 0.0, %v462
  %464 = vmatmul.bf16.gmra.mxu0 %v244
  %v465 = vpop.f32.mrf.mxu0
  %v466 = vadd.f32 0.0, %v465
  %v467 = vpop.f32.mrf.mxu0
  %v468 = vadd.f32 0.0, %v467
  %469 = vmatmul.bf16.gmra.mxu0 %v245
  %v470 = vpop.f32.mrf.mxu0
  %v471 = vadd.f32 0.0, %v470
  %v472 = vpop.f32.mrf.mxu0
  %v473 = vadd.f32 0.0, %v472
  %474 = vmatmul.bf16.gmra.mxu0 %v246
  %v475 = vpop.f32.mrf.mxu0
  %v476 = vadd.f32 0.0, %v475
  %v477 = vpop.f32.mrf.mxu0
  %v478 = vadd.f32 0.0, %v477
  %479 = vmatmul.bf16.gmra.mxu0 %v247
  %v480 = vpop.f32.mrf.mxu0
  %v481 = vadd.f32 0.0, %v480
  %v482 = vpop.f32.mrf.mxu0
  %v483 = vadd.f32 0.0, %v482
  %484 = vmatmul.bf16.gmra.mxu0 %v248
  %v485 = vpop.f32.mrf.mxu0
  %v486 = vadd.f32 0.0, %v485
  %v487 = vpop.f32.mrf.mxu0
  %v488 = vadd.f32 0.0, %v487
  %489 = vmatmul.bf16.gmra.mxu0 %v249
  %v490 = vpop.f32.mrf.mxu0
  %v491 = vadd.f32 0.0, %v490
  %v492 = vpop.f32.mrf.mxu0
  %v493 = vadd.f32 0.0, %v492
  %494 = vmatmul.bf16.gmra.mxu0 %v250
  %v495 = vpop.f32.mrf.mxu0
  %v496 = vadd.f32 0.0, %v495
  %v497 = vpop.f32.mrf.mxu0
  %v498 = vadd.f32 0.0, %v497
  %499 = vdwg.mxu0
  %v500 = vadd.f32 %v341, %v343
  %v501 = vadd.f32 %v500, %v346
  %v502 = vadd.f32 %v501, %v348
  %v503 = vadd.f32 %v502, %v351
  %v504 = vadd.f32 %v503, %v353
  %v505 = vadd.f32 %v504, %v356
  %v506 = vadd.f32 %v505, %v358
  %v507 = vadd.f32 %v506, %v361
  %v508 = vadd.f32 %v507, %v363
  %v509 = vadd.f32 %v508, %v366
  %v510 = vadd.f32 %v509, %v368
  %v511 = vadd.f32 %v510, %v371
  %v512 = vadd.f32 %v511, %v373
  %v513 = vadd.f32 %v512, %v376
  %v514 = vadd.f32 %v513, %v378
  %v515 = vadd.f32 %v514, %v381
  %v516 = vadd.f32 %v515, %v383
  %v517 = vadd.f32 %v516, %v386
  %v518 = vadd.f32 %v517, %v388
  %v519 = vadd.f32 %v518, %v391
  %v520 = vadd.f32 %v519, %v393
  %v521 = vadd.f32 %v520, %v396
  %v522 = vadd.f32 %v521, %v398
  %v523 = vadd.f32 %v522, %v401
  %v524 = vadd.f32 %v523, %v403
  %v525 = vadd.f32 %v524, %v406
  %v526 = vadd.f32 %v525, %v408
  %v527 = vadd.f32 %v526, %v411
  %v528 = vadd.f32 %v527, %v413
  %v529 = vadd.f32 %v528, %v416
  %v530 = vadd.f32 %v529, %v418
  %v531 = vadd.f32 %v530, %v421
  %v532 = vadd.f32 %v531, %v423
  %v533 = vadd.f32 %v532, %v426
  %v534 = vadd.f32 %v533, %v428
  %v535 = vadd.f32 %v534, %v431
  %v536 = vadd.f32 %v535, %v433
  %v537 = vadd.f32 %v536, %v436
  %v538 = vadd.f32 %v537, %v438
  %v539 = vadd.f32 %v538, %v441
  %v540 = vadd.f32 %v539, %v443
  %v541 = vadd.f32 %v540, %v446
  %v542 = vadd.f32 %v541, %v448
  %v543 = vadd.f32 %v542, %v451
  %v544 = vadd.f32 %v543, %v453
  %v545 = vadd.f32 %v544, %v456
  %v546 = vadd.f32 %v545, %v458
  %v547 = vadd.f32 %v546, %v461
  %v548 = vadd.f32 %v547, %v463
  %v549 = vadd.f32 %v548, %v466
  %v550 = vadd.f32 %v549, %v468
  %v551 = vadd.f32 %v550, %v471
  %v552 = vadd.f32 %v551, %v473
  %v553 = vadd.f32 %v552, %v476
  %v554 = vadd.f32 %v553, %v478
  %v555 = vadd.f32 %v554, %v481
  %v556 = vadd.f32 %v555, %v483
  %v557 = vadd.f32 %v556, %v486
  %v558 = vadd.f32 %v557, %v488
  %v559 = vadd.f32 %v558, %v491
  %v560 = vadd.f32 %v559, %v493
  %v561 = vadd.f32 %v560, %v496
  %v562 = vadd.f32 %v561, %v498
  %v563 = vrot.slane %v562, 4
  %v564 = vadd.f32 %v562, %v563
  %v565 = vrot.slane %v564, 2
  %v566 = vadd.f32 %v564, %v565
  %v567 = vrot.slane %v566, 1
  %v568 = vadd.f32 %v566, %v567
  %v569 = vmul.f32 %v341, %v341
  %v570 = vmul.f32 %v343, %v343
  %v571 = vmul.f32 %v346, %v346
  %v572 = vmul.f32 %v348, %v348
  %v573 = vmul.f32 %v351, %v351
  %v574 = vmul.f32 %v353, %v353
  %v575 = vmul.f32 %v356, %v356
  %v576 = vmul.f32 %v358, %v358
  %v577 = vmul.f32 %v361, %v361
  %v578 = vmul.f32 %v363, %v363
  %v579 = vmul.f32 %v366, %v366
  %v580 = vmul.f32 %v368, %v368
  %v581 = vmul.f32 %v371, %v371
  %v582 = vmul.f32 %v373, %v373
  %v583 = vmul.f32 %v376, %v376
  %v584 = vmul.f32 %v378, %v378
  %v585 = vmul.f32 %v381, %v381
  %v586 = vmul.f32 %v383, %v383
  %v587 = vmul.f32 %v386, %v386
  %v588 = vmul.f32 %v388, %v388
  %v589 = vmul.f32 %v391, %v391
  %v590 = vmul.f32 %v393, %v393
  %v591 = vmul.f32 %v396, %v396
  %v592 = vmul.f32 %v398, %v398
  %v593 = vmul.f32 %v401, %v401
  %v594 = vmul.f32 %v403, %v403
  %v595 = vmul.f32 %v406, %v406
  %v596 = vmul.f32 %v408, %v408
  %v597 = vmul.f32 %v411, %v411
  %v598 = vmul.f32 %v413, %v413
  %v599 = vmul.f32 %v416, %v416
  %v600 = vmul.f32 %v418, %v418
  %v601 = vmul.f32 %v421, %v421
  %v602 = vmul.f32 %v423, %v423
  %v603 = vmul.f32 %v426, %v426
  %v604 = vmul.f32 %v428, %v428
  %v605 = vmul.f32 %v431, %v431
  %v606 = vmul.f32 %v433, %v433
  %v607 = vmul.f32 %v436, %v436
  %v608 = vmul.f32 %v438, %v438
  %v609 = vmul.f32 %v441, %v441
  %v610 = vmul.f32 %v443, %v443
  %v611 = vmul.f32 %v446, %v446
  %v612 = vmul.f32 %v448, %v448
  %v613 = vmul.f32 %v451, %v451
  %v614 = vmul.f32 %v453, %v453
  %v615 = vmul.f32 %v456, %v456
  %v616 = vmul.f32 %v458, %v458
  %v617 = vmul.f32 %v461, %v461
  %v618 = vmul.f32 %v463, %v463
  %v619 = vmul.f32 %v466, %v466
  %v620 = vmul.f32 %v468, %v468
  %v621 = vmul.f32 %v471, %v471
  %v622 = vmul.f32 %v473, %v473
  %v623 = vmul.f32 %v476, %v476
  %v624 = vmul.f32 %v478, %v478
  %v625 = vmul.f32 %v481, %v481
  %v626 = vmul.f32 %v483, %v483
  %v627 = vmul.f32 %v486, %v486
  %v628 = vmul.f32 %v488, %v488
  %v629 = vmul.f32 %v491, %v491
  %v630 = vmul.f32 %v493, %v493
  %v631 = vmul.f32 %v496, %v496
  %v632 = vmul.f32 %v498, %v498
  %v633 = vadd.f32 %v569, %v570
  %v634 = vadd.f32 %v633, %v571
  %v635 = vadd.f32 %v634, %v572
  %v636 = vadd.f32 %v635, %v573
  %v637 = vadd.f32 %v636, %v574
  %v638 = vadd.f32 %v637, %v575
  %v639 = vadd.f32 %v638, %v576
  %v640 = vadd.f32 %v639, %v577
  %v641 = vadd.f32 %v640, %v578
  %v642 = vadd.f32 %v641, %v579
  %v643 = vadd.f32 %v642, %v580
  %v644 = vadd.f32 %v643, %v581
  %v645 = vadd.f32 %v644, %v582
  %v646 = vadd.f32 %v645, %v583
  %v647 = vadd.f32 %v646, %v584
  %v648 = vadd.f32 %v647, %v585
  %v649 = vadd.f32 %v648, %v586
  %v650 = vadd.f32 %v649, %v587
  %v651 = vadd.f32 %v650, %v588
  %v652 = vadd.f32 %v651, %v589
  %v653 = vadd.f32 %v652, %v590
  %v654 = vadd.f32 %v653, %v591
  %v655 = vadd.f32 %v654, %v592
  %v656 = vadd.f32 %v655, %v593
  %v657 = vadd.f32 %v656, %v594
  %v658 = vadd.f32 %v657, %v595
  %v659 = vadd.f32 %v658, %v596
  %v660 = vadd.f32 %v659, %v597
  %v661 = vadd.f32 %v660, %v598
  %v662 = vadd.f32 %v661, %v599
  %v663 = vadd.f32 %v662, %v600
  %v664 = vadd.f32 %v663, %v601
  %v665 = vadd.f32 %v664, %v602
  %v666 = vadd.f32 %v665, %v603
  %v667 = vadd.f32 %v666, %v604
  %v668 = vadd.f32 %v667, %v605
  %v669 = vadd.f32 %v668, %v606
  %v670 = vadd.f32 %v669, %v607
  %v671 = vadd.f32 %v670, %v608
  %v672 = vadd.f32 %v671, %v609
  %v673 = vadd.f32 %v672, %v610
  %v674 = vadd.f32 %v673, %v611
  %v675 = vadd.f32 %v674, %v612
  %v676 = vadd.f32 %v675, %v613
  %v677 = vadd.f32 %v676, %v614
  %v678 = vadd.f32 %v677, %v615
  %v679 = vadd.f32 %v678, %v616
  %v680 = vadd.f32 %v679, %v617
  %v681 = vadd.f32 %v680, %v618
  %v682 = vadd.f32 %v681, %v619
  %v683 = vadd.f32 %v682, %v620
  %v684 = vadd.f32 %v683, %v621
  %v685 = vadd.f32 %v684, %v622
  %v686 = vadd.f32 %v685, %v623
  %v687 = vadd.f32 %v686, %v624
  %v688 = vadd.f32 %v687, %v625
  %v689 = vadd.f32 %v688, %v626
  %v690 = vadd.f32 %v689, %v627
  %v691 = vadd.f32 %v690, %v628
  %v692 = vadd.f32 %v691, %v629
  %v693 = vadd.f32 %v692, %v630
  %v694 = vadd.f32 %v693, %v631
  %v695 = vadd.f32 %v694, %v632
  %v696 = vrot.slane %v695, 4
  %v697 = vadd.f32 %v695, %v696
  %v698 = vrot.slane %v697, 2
  %v699 = vadd.f32 %v697, %v698
  %v700 = vrot.slane %v699, 1
  %v701 = vadd.f32 %v699, %v700
  %vm702 = vcmask 1040384
  %v703 = vsel %vm702, %v568, %v701
  %vm704 = vcmask 1041408
  %v705 = vsel %vm704, %v703, 0.0
  %706 = vst [vmem:[%s2] sm:$0xff] %v705
  // Predicated region
  $region10: #{basic_block_forward.2} parent=0 // pred_check
    _
  $region11: #{basic_block_forward.2} parent=0 // pred_check_branch
    %708 = sbr.rel (0) target = $region13
  $region12: #{basic_block_forward.2} parent=0 // pred_region
    _
  $region13: #{basic_block_forward.2} parent=0 // pred_fallthru
    _
  // Predicated region
  $region14: #{basic_block_forward.2} parent=0 // pred_check
    _
  $region15: #{basic_block_forward.2} parent=0 // pred_check_branch
    %710 = sbr.rel (0) target = $region17
  $region16: #{basic_block_forward.2} parent=0 // pred_region
    _
  $region17: #{basic_block_forward.2} parent=0 // pred_fallthru
    _

// kernel: basic_block_forward.3
$region0: #{basic_block_forward.3}
  #allocation0 [shape = 'u32[]', space=smem, size = 0x4, offset = 0x4, fixed_abs, tag = 'smem constant byte address 0x4 - core index']
  #allocation1 [shape = 'u32[72,128]{1,0:T(1,128)}', space=vmem, size = 0x9000, scoped, tag = 'internal scratch']
  %s0 = inlined_call_operand.vmem [shape: bf16[512,128], index: 0, kind: input, shape index: {}]
  %s1 = inlined_call_operand.vmem [shape: bf16[128,128], index: 1, kind: input, shape index: {}]
  %s2 = inlined_call_operand.vmem [shape: f32[1,128], index: 2, kind: input, shape index: {}]
  %s3 = inlined_call_operand.vmem [shape: f32[1,128], index: 3, kind: input, shape index: {}]
  %s4 = inlined_call_operand.vmem [shape: f32[512,128], index: 4, kind: output, shape index: {}]
  %s5 = sld [smem:[#allocation0]]
  $region26: #{basic_block_forward.3} parent=0
    _
  %s7 = ssub.s32 1, %s5
  %s8 = scalar_select 0, %s7, %s5
  // Predicated region
  $region2: #{basic_block_forward.3} parent=0 // pred_check
    _
  $region3: #{basic_block_forward.3} parent=0 // pred_check_branch
    %10 = sbr.rel (0) target = $region5
  $region4: #{basic_block_forward.3} parent=0 // pred_region
    _
  $region5: #{basic_block_forward.3} parent=0 // pred_fallthru
    _
  // Predicated region
  $region6: #{basic_block_forward.3} parent=0 // pred_check
    _
  $region7: #{basic_block_forward.3} parent=0 // pred_check_branch
    %12 = sbr.rel (0) target = $region9
  $region8: #{basic_block_forward.3} parent=0 // pred_region
    _
  $region9: #{basic_block_forward.3} parent=0 // pred_fallthru
    _
  // Predicated region
  $region10: #{basic_block_forward.3} parent=0 // pred_check
    _
  $region11: #{basic_block_forward.3} parent=0 // pred_check_branch
    %14 = sbr.rel (0) target = $region13
  $region12: #{basic_block_forward.3} parent=0 // pred_region
    _
  $region13: #{basic_block_forward.3} parent=0 // pred_fallthru
    _
  // Predicated region
  $region14: #{basic_block_forward.3} parent=0 // pred_check
    _
  $region15: #{basic_block_forward.3} parent=0 // pred_check_branch
    %16 = sbr.rel (0) target = $region17
  $region16: #{basic_block_forward.3} parent=0 // pred_region
    _
  $region17: #{basic_block_forward.3} parent=0 // pred_fallthru
    _
  %v17 = vld [vmem:[%s0] sm:$0xf]
  %v18 = vld [vmem:[%s0 + $0x4] sm:$0xf]
  %v19 = vld [vmem:[%s0 + $0x8] sm:$0xf]
  %v20 = vld [vmem:[%s0 + $0xc] sm:$0xf]
  %v21 = vld [vmem:[%s0 + $0x10] sm:$0xf]
  %v22 = vld [vmem:[%s0 + $0x14] sm:$0xf]
  %v23 = vld [vmem:[%s0 + $0x18] sm:$0xf]
  %v24 = vld [vmem:[%s0 + $0x1c] sm:$0xf]
  %v25 = vld [vmem:[%s0 + $0x20] sm:$0xf]
  %v26 = vld [vmem:[%s0 + $0x24] sm:$0xf]
  %v27 = vld [vmem:[%s0 + $0x28] sm:$0xf]
  %v28 = vld [vmem:[%s0 + $0x2c] sm:$0xf]
  %v29 = vld [vmem:[%s0 + $0x30] sm:$0xf]
  %v30 = vld [vmem:[%s0 + $0x34] sm:$0xf]
  %v31 = vld [vmem:[%s0 + $0x38] sm:$0xf]
  %v32 = vld [vmem:[%s0 + $0x3c] sm:$0xf]
  %v33 = vld [vmem:[%s0 + $0x40] sm:$0xf]
  %v34 = vld [vmem:[%s0 + $0x44] sm:$0xf]
  %v35 = vld [vmem:[%s0 + $0x48] sm:$0xf]
  %v36 = vld [vmem:[%s0 + $0x4c] sm:$0xf]
  %v37 = vld [vmem:[%s0 + $0x50] sm:$0xf]
  %v38 = vld [vmem:[%s0 + $0x54] sm:$0xf]
  %v39 = vld [vmem:[%s0 + $0x58] sm:$0xf]
  %v40 = vld [vmem:[%s0 + $0x5c] sm:$0xf]
  %v41 = vld [vmem:[%s0 + $0x60] sm:$0xf]
  %v42 = vld [vmem:[%s0 + $0x64] sm:$0xf]
  %v43 = vld [vmem:[%s0 + $0x68] sm:$0xf]
  %v44 = vld [vmem:[%s0 + $0x6c] sm:$0xf]
  %v45 = vld [vmem:[%s0 + $0x70] sm:$0xf]
  %v46 = vld [vmem:[%s0 + $0x74] sm:$0xf]
  %v47 = vld [vmem:[%s0 + $0x78] sm:$0xf]
  %v48 = vld [vmem:[%s0 + $0x7c] sm:$0xf]
  %v49 = vld [vmem:[%s0 + $0x80] sm:$0xf]
  %v50 = vld [vmem:[%s0 + $0x84] sm:$0xf]
  %v51 = vld [vmem:[%s0 + $0x88] sm:$0xf]
  %v52 = vld [vmem:[%s0 + $0x8c] sm:$0xf]
  %v53 = vld [vmem:[%s0 + $0x90] sm:$0xf]
  %v54 = vld [vmem:[%s0 + $0x94] sm:$0xf]
  %v55 = vld [vmem:[%s0 + $0x98] sm:$0xf]
  %v56 = vld [vmem:[%s0 + $0x9c] sm:$0xf]
  %v57 = vld [vmem:[%s0 + $0xa0] sm:$0xf]
  %v58 = vld [vmem:[%s0 + $0xa4] sm:$0xf]
  %v59 = vld [vmem:[%s0 + $0xa8] sm:$0xf]
  %v60 = vld [vmem:[%s0 + $0xac] sm:$0xf]
  %v61 = vld [vmem:[%s0 + $0xb0] sm:$0xf]
  %v62 = vld [vmem:[%s0 + $0xb4] sm:$0xf]
  %v63 = vld [vmem:[%s0 + $0xb8] sm:$0xf]
  %v64 = vld [vmem:[%s0 + $0xbc] sm:$0xf]
  %v65 = vld [vmem:[%s0 + $0xc0] sm:$0xf]
  %v66 = vld [vmem:[%s0 + $0xc4] sm:$0xf]
  %v67 = vld [vmem:[%s0 + $0xc8] sm:$0xf]
  %v68 = vld [vmem:[%s0 + $0xcc] sm:$0xf]
  %v69 = vld [vmem:[%s0 + $0xd0] sm:$0xf]
  %v70 = vld [vmem:[%s0 + $0xd4] sm:$0xf]
  %v71 = vld [vmem:[%s0 + $0xd8] sm:$0xf]
  %v72 = vld [vmem:[%s0 + $0xdc] sm:$0xf]
  %v73 = vld [vmem:[%s0 + $0xe0] sm:$0xf]
  %v74 = vld [vmem:[%s0 + $0xe4] sm:$0xf]
  %v75 = vld [vmem:[%s0 + $0xe8] sm:$0xf]
  %v76 = vld [vmem:[%s0 + $0xec] sm:$0xf]
  %v77 = vld [vmem:[%s0 + $0xf0] sm:$0xf]
  %v78 = vld [vmem:[%s0 + $0xf4] sm:$0xf]
  %v79 = vld [vmem:[%s0 + $0xf8] sm:$0xf]
  %v80 = vld [vmem:[%s0 + $0xfc] sm:$0xf]
  %v81 = vld [vmem:[%s1] sm:$0xf]
  %v82 = vld [vmem:[%s1 + $0x4] sm:$0xf]
  %v83 = vld [vmem:[%s1 + $0x8] sm:$0xf]
  %v84 = vld [vmem:[%s1 + $0xc] sm:$0xf]
  %v85 = vld [vmem:[%s1 + $0x10] sm:$0xf]
  %v86 = vld [vmem:[%s1 + $0x14] sm:$0xf]
  %v87 = vld [vmem:[%s1 + $0x18] sm:$0xf]
  %v88 = vld [vmem:[%s1 + $0x1c] sm:$0xf]
  %v89 = vld [vmem:[%s1 + $0x20] sm:$0xf]
  %v90 = vld [vmem:[%s1 + $0x24] sm:$0xf]
  %v91 = vld [vmem:[%s1 + $0x28] sm:$0xf]
  %v92 = vld [vmem:[%s1 + $0x2c] sm:$0xf]
  %v93 = vld [vmem:[%s1 + $0x30] sm:$0xf]
  %v94 = vld [vmem:[%s1 + $0x34] sm:$0xf]
  %v95 = vld [vmem:[%s1 + $0x38] sm:$0xf]
  %v96 = vld [vmem:[%s1 + $0x3c] sm:$0xf]
  %v161 = vunpack.c.l.b16 %v17
  %v162 = vunpack.c.l.b16 %v18
  %v163 = vunpack.c.l.b16 %v19
  %v164 = vunpack.c.l.b16 %v20
  %v165 = vunpack.c.l.b16 %v21
  %v166 = vunpack.c.l.b16 %v22
  %v167 = vunpack.c.l.b16 %v23
  %v168 = vunpack.c.l.b16 %v24
  %v169 = vunpack.c.l.b16 %v25
  %v170 = vunpack.c.l.b16 %v26
  %v171 = vunpack.c.l.b16 %v27
  %v172 = vunpack.c.l.b16 %v28
  %v173 = vunpack.c.l.b16 %v29
  %v174 = vunpack.c.l.b16 %v30
  %v175 = vunpack.c.l.b16 %v31
  %v176 = vunpack.c.l.b16 %v32
  %v177 = vunpack.c.l.b16 %v33
  %v178 = vunpack.c.l.b16 %v34
  %v179 = vunpack.c.l.b16 %v35
  %v180 = vunpack.c.l.b16 %v36
  %v181 = vunpack.c.l.b16 %v37
  %v182 = vunpack.c.l.b16 %v38
  %v183 = vunpack.c.l.b16 %v39
  %v184 = vunpack.c.l.b16 %v40
  %v185 = vunpack.c.l.b16 %v41
  %v186 = vunpack.c.l.b16 %v42
  %v187 = vunpack.c.l.b16 %v43
  %v188 = vunpack.c.l.b16 %v44
  %v189 = vunpack.c.l.b16 %v45
  %v190 = vunpack.c.l.b16 %v46
  %v191 = vunpack.c.l.b16 %v47
  %v192 = vunpack.c.l.b16 %v48
  %v193 = vunpack.c.l.b16 %v49
  %v194 = vunpack.c.l.b16 %v50
  %v195 = vunpack.c.l.b16 %v51
  %v196 = vunpack.c.l.b16 %v52
  %v197 = vunpack.c.l.b16 %v53
  %v198 = vunpack.c.l.b16 %v54
  %v199 = vunpack.c.l.b16 %v55
  %v200 = vunpack.c.l.b16 %v56
  %v201 = vunpack.c.l.b16 %v57
  %v202 = vunpack.c.l.b16 %v58
  %v203 = vunpack.c.l.b16 %v59
  %v204 = vunpack.c.l.b16 %v60
  %v205 = vunpack.c.l.b16 %v61
  %v206 = vunpack.c.l.b16 %v62
  %v207 = vunpack.c.l.b16 %v63
  %v208 = vunpack.c.l.b16 %v64
  %v209 = vunpack.c.l.b16 %v65
  %v210 = vunpack.c.l.b16 %v66
  %v211 = vunpack.c.l.b16 %v67
  %v212 = vunpack.c.l.b16 %v68
  %v213 = vunpack.c.l.b16 %v69
  %v214 = vunpack.c.l.b16 %v70
  %v215 = vunpack.c.l.b16 %v71
  %v216 = vunpack.c.l.b16 %v72
  %v217 = vunpack.c.l.b16 %v73
  %v218 = vunpack.c.l.b16 %v74
  %v219 = vunpack.c.l.b16 %v75
  %v220 = vunpack.c.l.b16 %v76
  %v221 = vunpack.c.l.b16 %v77
  %v222 = vunpack.c.l.b16 %v78
  %v223 = vunpack.c.l.b16 %v79
  %v224 = vunpack.c.l.b16 %v80
  %v225 = vpack.c.b16 %v162, %v161
  %v226 = vpack.c.b16 %v164, %v163
  %v227 = vpack.c.b16 %v166, %v165
  %v228 = vpack.c.b16 %v168, %v167
  %v229 = vpack.c.b16 %v170, %v169
  %v230 = vpack.c.b16 %v172, %v171
  %v231 = vpack.c.b16 %v174, %v173
  %v232 = vpack.c.b16 %v176, %v175
  %v233 = vpack.c.b16 %v178, %v177
  %v234 = vpack.c.b16 %v180, %v179
  %v235 = vpack.c.b16 %v182, %v181
  %v236 = vpack.c.b16 %v184, %v183
  %v237 = vpack.c.b16 %v186, %v185
  %v238 = vpack.c.b16 %v188, %v187
  %v239 = vpack.c.b16 %v190, %v189
  %v240 = vpack.c.b16 %v192, %v191
  %v241 = vpack.c.b16 %v194, %v193
  %v242 = vpack.c.b16 %v196, %v195
  %v243 = vpack.c.b16 %v198, %v197
  %v244 = vpack.c.b16 %v200, %v199
  %v245 = vpack.c.b16 %v202, %v201
  %v246 = vpack.c.b16 %v204, %v203
  %v247 = vpack.c.b16 %v206, %v205
  %v248 = vpack.c.b16 %v208, %v207
  %v249 = vpack.c.b16 %v210, %v209
  %v250 = vpack.c.b16 %v212, %v211
  %v251 = vpack.c.b16 %v214, %v213
  %v252 = vpack.c.b16 %v216, %v215
  %v253 = vpack.c.b16 %v218, %v217
  %v254 = vpack.c.b16 %v220, %v219
  %v255 = vpack.c.b16 %v222, %v221
  %v256 = vpack.c.b16 %v224, %v223
  %v305 = vunpack.c.l.b16 %v81
  %v306 = vunpack.c.l.b16 %v82
  %v307 = vunpack.c.l.b16 %v83
  %v308 = vunpack.c.l.b16 %v84
  %v309 = vunpack.c.l.b16 %v85
  %v310 = vunpack.c.l.b16 %v86
  %v311 = vunpack.c.l.b16 %v87
  %v312 = vunpack.c.l.b16 %v88
  %v313 = vunpack.c.l.b16 %v89
  %v314 = vunpack.c.l.b16 %v90
  %v315 = vunpack.c.l.b16 %v91
  %v316 = vunpack.c.l.b16 %v92
  %v317 = vunpack.c.l.b16 %v93
  %v318 = vunpack.c.l.b16 %v94
  %v319 = vunpack.c.l.b16 %v95
  %v320 = vunpack.c.l.b16 %v96
  %v321 = vpack.c.b16 %v306, %v305
  %v322 = vpack.c.b16 %v308, %v307
  %v323 = vpack.c.b16 %v310, %v309
  %v324 = vpack.c.b16 %v312, %v311
  %v325 = vpack.c.b16 %v314, %v313
  %v326 = vpack.c.b16 %v316, %v315
  %v327 = vpack.c.b16 %v318, %v317
  %v328 = vpack.c.b16 %v320, %v319
  %337 = vmatpush.bf16.msra.mxu0 %v328
  %338 = vmatpush.bf16.msra.mxu0 %v327
  %339 = vmatpush.bf16.msra.mxu0 %v326
  %340 = vmatpush.bf16.msra.mxu0 %v325
  %341 = vmatpush.bf16.msra.mxu0 %v324
  %342 = vmatpush.bf16.msra.mxu0 %v323
  %343 = vmatpush.bf16.msra.mxu0 %v322
  %344 = vmatpush.bf16.msra.mxu0 %v321
  %345 = vmatmul.bf16.gmra.mxu0 %v225
  %v346 = vpop.f32.mrf.mxu0
  %v347 = vadd.f32 0.0, %v346
  %v348 = vpop.f32.mrf.mxu0
  %v349 = vadd.f32 0.0, %v348
  %350 = vmatmul.bf16.gmra.mxu0 %v226
  %v351 = vpop.f32.mrf.mxu0
  %v352 = vadd.f32 0.0, %v351
  %v353 = vpop.f32.mrf.mxu0
  %v354 = vadd.f32 0.0, %v353
  %355 = vmatmul.bf16.gmra.mxu0 %v227
  %v356 = vpop.f32.mrf.mxu0
  %v357 = vadd.f32 0.0, %v356
  %v358 = vpop.f32.mrf.mxu0
  %v359 = vadd.f32 0.0, %v358
  %360 = vmatmul.bf16.gmra.mxu0 %v228
  %v361 = vpop.f32.mrf.mxu0
  %v362 = vadd.f32 0.0, %v361
  %v363 = vpop.f32.mrf.mxu0
  %v364 = vadd.f32 0.0, %v363
  %365 = vmatmul.bf16.gmra.mxu0 %v229
  %v366 = vpop.f32.mrf.mxu0
  %v367 = vadd.f32 0.0, %v366
  %v368 = vpop.f32.mrf.mxu0
  %v369 = vadd.f32 0.0, %v368
  %370 = vmatmul.bf16.gmra.mxu0 %v230
  %v371 = vpop.f32.mrf.mxu0
  %v372 = vadd.f32 0.0, %v371
  %v373 = vpop.f32.mrf.mxu0
  %v374 = vadd.f32 0.0, %v373
  %375 = vmatmul.bf16.gmra.mxu0 %v231
  %v376 = vpop.f32.mrf.mxu0
  %v377 = vadd.f32 0.0, %v376
  %v378 = vpop.f32.mrf.mxu0
  %v379 = vadd.f32 0.0, %v378
  %380 = vmatmul.bf16.gmra.mxu0 %v232
  %v381 = vpop.f32.mrf.mxu0
  %v382 = vadd.f32 0.0, %v381
  %v383 = vpop.f32.mrf.mxu0
  %v384 = vadd.f32 0.0, %v383
  %385 = vmatmul.bf16.gmra.mxu0 %v233
  %v386 = vpop.f32.mrf.mxu0
  %v387 = vadd.f32 0.0, %v386
  %v388 = vpop.f32.mrf.mxu0
  %v389 = vadd.f32 0.0, %v388
  %390 = vmatmul.bf16.gmra.mxu0 %v234
  %v391 = vpop.f32.mrf.mxu0
  %v392 = vadd.f32 0.0, %v391
  %v393 = vpop.f32.mrf.mxu0
  %v394 = vadd.f32 0.0, %v393
  %395 = vmatmul.bf16.gmra.mxu0 %v235
  %v396 = vpop.f32.mrf.mxu0
  %v397 = vadd.f32 0.0, %v396
  %v398 = vpop.f32.mrf.mxu0
  %v399 = vadd.f32 0.0, %v398
  %400 = vmatmul.bf16.gmra.mxu0 %v236
  %v401 = vpop.f32.mrf.mxu0
  %v402 = vadd.f32 0.0, %v401
  %v403 = vpop.f32.mrf.mxu0
  %v404 = vadd.f32 0.0, %v403
  %405 = vmatmul.bf16.gmra.mxu0 %v237
  %v406 = vpop.f32.mrf.mxu0
  %v407 = vadd.f32 0.0, %v406
  %v408 = vpop.f32.mrf.mxu0
  %v409 = vadd.f32 0.0, %v408
  %410 = vmatmul.bf16.gmra.mxu0 %v238
  %v411 = vpop.f32.mrf.mxu0
  %v412 = vadd.f32 0.0, %v411
  %v413 = vpop.f32.mrf.mxu0
  %v414 = vadd.f32 0.0, %v413
  %415 = vmatmul.bf16.gmra.mxu0 %v239
  %v416 = vpop.f32.mrf.mxu0
  %v417 = vadd.f32 0.0, %v416
  %v418 = vpop.f32.mrf.mxu0
  %v419 = vadd.f32 0.0, %v418
  %420 = vmatmul.bf16.gmra.mxu0 %v240
  %v421 = vpop.f32.mrf.mxu0
  %v422 = vadd.f32 0.0, %v421
  %v423 = vpop.f32.mrf.mxu0
  %v424 = vadd.f32 0.0, %v423
  %425 = vmatmul.bf16.gmra.mxu0 %v241
  %v426 = vpop.f32.mrf.mxu0
  %v427 = vadd.f32 0.0, %v426
  %v428 = vpop.f32.mrf.mxu0
  %v429 = vadd.f32 0.0, %v428
  %430 = vmatmul.bf16.gmra.mxu0 %v242
  %v431 = vpop.f32.mrf.mxu0
  %v432 = vadd.f32 0.0, %v431
  %v433 = vpop.f32.mrf.mxu0
  %v434 = vadd.f32 0.0, %v433
  %435 = vmatmul.bf16.gmra.mxu0 %v243
  %v436 = vpop.f32.mrf.mxu0
  %v437 = vadd.f32 0.0, %v436
  %v438 = vpop.f32.mrf.mxu0
  %v439 = vadd.f32 0.0, %v438
  %440 = vmatmul.bf16.gmra.mxu0 %v244
  %v441 = vpop.f32.mrf.mxu0
  %v442 = vadd.f32 0.0, %v441
  %v443 = vpop.f32.mrf.mxu0
  %v444 = vadd.f32 0.0, %v443
  %445 = vmatmul.bf16.gmra.mxu0 %v245
  %v446 = vpop.f32.mrf.mxu0
  %v447 = vadd.f32 0.0, %v446
  %v448 = vpop.f32.mrf.mxu0
  %v449 = vadd.f32 0.0, %v448
  %450 = vmatmul.bf16.gmra.mxu0 %v246
  %v451 = vpop.f32.mrf.mxu0
  %v452 = vadd.f32 0.0, %v451
  %v453 = vpop.f32.mrf.mxu0
  %v454 = vadd.f32 0.0, %v453
  %455 = vmatmul.bf16.gmra.mxu0 %v247
  %v456 = vpop.f32.mrf.mxu0
  %v457 = vadd.f32 0.0, %v456
  %v458 = vpop.f32.mrf.mxu0
  %v459 = vadd.f32 0.0, %v458
  %460 = vmatmul.bf16.gmra.mxu0 %v248
  %v461 = vpop.f32.mrf.mxu0
  %v462 = vadd.f32 0.0, %v461
  %v463 = vpop.f32.mrf.mxu0
  %v464 = vadd.f32 0.0, %v463
  %465 = vmatmul.bf16.gmra.mxu0 %v249
  %v466 = vpop.f32.mrf.mxu0
  %v467 = vadd.f32 0.0, %v466
  %v468 = vpop.f32.mrf.mxu0
  %v469 = vadd.f32 0.0, %v468
  %470 = vmatmul.bf16.gmra.mxu0 %v250
  %v471 = vpop.f32.mrf.mxu0
  %v472 = vadd.f32 0.0, %v471
  %v473 = vpop.f32.mrf.mxu0
  %v474 = vadd.f32 0.0, %v473
  %475 = vmatmul.bf16.gmra.mxu0 %v251
  %v476 = vpop.f32.mrf.mxu0
  %v477 = vadd.f32 0.0, %v476
  %v478 = vpop.f32.mrf.mxu0
  %v479 = vadd.f32 0.0, %v478
  %480 = vmatmul.bf16.gmra.mxu0 %v252
  %v481 = vpop.f32.mrf.mxu0
  %v482 = vadd.f32 0.0, %v481
  %v483 = vpop.f32.mrf.mxu0
  %v484 = vadd.f32 0.0, %v483
  %485 = vmatmul.bf16.gmra.mxu0 %v253
  %v486 = vpop.f32.mrf.mxu0
  %v487 = vadd.f32 0.0, %v486
  %v488 = vpop.f32.mrf.mxu0
  %v489 = vadd.f32 0.0, %v488
  %490 = vmatmul.bf16.gmra.mxu0 %v254
  %v491 = vpop.f32.mrf.mxu0
  %v492 = vadd.f32 0.0, %v491
  %v493 = vpop.f32.mrf.mxu0
  %v494 = vadd.f32 0.0, %v493
  %495 = vmatmul.bf16.gmra.mxu0 %v255
  %v496 = vpop.f32.mrf.mxu0
  %v497 = vadd.f32 0.0, %v496
  %v498 = vpop.f32.mrf.mxu0
  %v499 = vadd.f32 0.0, %v498
  %500 = vmatmul.bf16.gmra.mxu0 %v256
  %v501 = vpop.f32.mrf.mxu0
  %v502 = vadd.f32 0.0, %v501
  %v503 = vpop.f32.mrf.mxu0
  %v504 = vadd.f32 0.0, %v503
  %505 = vdwg.mxu0
  %v506 = vld [vmem:[%s2] sm:$0x1]
  %v508 = vperm.slane %v506, 0
  %v510 = vmul.f32 %v347, %v508
  %v511 = vmul.f32 %v349, %v508
  %v512 = vmul.f32 %v352, %v508
  %v513 = vmul.f32 %v354, %v508
  %v514 = vmul.f32 %v357, %v508
  %v515 = vmul.f32 %v359, %v508
  %v516 = vmul.f32 %v362, %v508
  %v517 = vmul.f32 %v364, %v508
  %v518 = vmul.f32 %v367, %v508
  %v519 = vmul.f32 %v369, %v508
  %v520 = vmul.f32 %v372, %v508
  %v521 = vmul.f32 %v374, %v508
  %v522 = vmul.f32 %v377, %v508
  %v523 = vmul.f32 %v379, %v508
  %v524 = vmul.f32 %v382, %v508
  %v525 = vmul.f32 %v384, %v508
  %v526 = vmul.f32 %v387, %v508
  %v527 = vmul.f32 %v389, %v508
  %v528 = vmul.f32 %v392, %v508
  %v529 = vmul.f32 %v394, %v508
  %v530 = vmul.f32 %v397, %v508
  %v531 = vmul.f32 %v399, %v508
  %v532 = vmul.f32 %v402, %v508
  %v533 = vmul.f32 %v404, %v508
  %v534 = vmul.f32 %v407, %v508
  %v535 = vmul.f32 %v409, %v508
  %v536 = vmul.f32 %v412, %v508
  %v537 = vmul.f32 %v414, %v508
  %v538 = vmul.f32 %v417, %v508
  %v539 = vmul.f32 %v419, %v508
  %v540 = vmul.f32 %v422, %v508
  %v541 = vmul.f32 %v424, %v508
  %v542 = vmul.f32 %v427, %v508
  %v543 = vmul.f32 %v429, %v508
  %v544 = vmul.f32 %v432, %v508
  %v545 = vmul.f32 %v434, %v508
  %v546 = vmul.f32 %v437, %v508
  %v547 = vmul.f32 %v439, %v508
  %v548 = vmul.f32 %v442, %v508
  %v549 = vmul.f32 %v444, %v508
  %v550 = vmul.f32 %v447, %v508
  %v551 = vmul.f32 %v449, %v508
  %v552 = vmul.f32 %v452, %v508
  %v553 = vmul.f32 %v454, %v508
  %v554 = vmul.f32 %v457, %v508
  %v555 = vmul.f32 %v459, %v508
  %v556 = vmul.f32 %v462, %v508
  %v557 = vmul.f32 %v464, %v508
  %v558 = vmul.f32 %v467, %v508
  %v559 = vmul.f32 %v469, %v508
  %v560 = vmul.f32 %v472, %v508
  %v561 = vmul.f32 %v474, %v508
  %v562 = vmul.f32 %v477, %v508
  %v563 = vmul.f32 %v479, %v508
  %v564 = vmul.f32 %v482, %v508
  %v565 = vmul.f32 %v484, %v508
  %v566 = vmul.f32 %v487, %v508
  %v567 = vmul.f32 %v489, %v508
  %v568 = vmul.f32 %v492, %v508
  %v569 = vmul.f32 %v494, %v508
  %v570 = vmul.f32 %v497, %v508
  %v571 = vmul.f32 %v499, %v508
  %v572 = vmul.f32 %v502, %v508
  %v573 = vmul.f32 %v504, %v508
  %v574 = vld [vmem:[%s3] sm:$0x1]
  %v576 = vperm.slane %v574, 0
  %v578 = vadd.f32 %v510, %v576
  %v579 = vadd.f32 %v511, %v576
  %v580 = vadd.f32 %v512, %v576
  %v581 = vadd.f32 %v513, %v576
  %v582 = vadd.f32 %v514, %v576
  %v583 = vadd.f32 %v515, %v576
  %v584 = vadd.f32 %v516, %v576
  %v585 = vadd.f32 %v517, %v576
  %v586 = vadd.f32 %v518, %v576
  %v587 = vadd.f32 %v519, %v576
  %v588 = vadd.f32 %v520, %v576
  %v589 = vadd.f32 %v521, %v576
  %v590 = vadd.f32 %v522, %v576
  %v591 = vadd.f32 %v523, %v576
  %v592 = vadd.f32 %v524, %v576
  %v593 = vadd.f32 %v525, %v576
  %v594 = vadd.f32 %v526, %v576
  %v595 = vadd.f32 %v527, %v576
  %v596 = vadd.f32 %v528, %v576
  %v597 = vadd.f32 %v529, %v576
  %v598 = vadd.f32 %v530, %v576
  %v599 = vadd.f32 %v531, %v576
  %v600 = vadd.f32 %v532, %v576
  %v601 = vadd.f32 %v533, %v576
  %v602 = vadd.f32 %v534, %v576
  %v603 = vadd.f32 %v535, %v576
  %v604 = vadd.f32 %v536, %v576
  %v605 = vadd.f32 %v537, %v576
  %v606 = vadd.f32 %v538, %v576
  %v607 = vadd.f32 %v539, %v576
  %v608 = vadd.f32 %v540, %v576
  %v609 = vadd.f32 %v541, %v576
  %v610 = vadd.f32 %v542, %v576
  %v611 = vadd.f32 %v543, %v576
  %v612 = vadd.f32 %v544, %v576
  %v613 = vadd.f32 %v545, %v576
  %v614 = vadd.f32 %v546, %v576
  %v615 = vadd.f32 %v547, %v576
  %v616 = vadd.f32 %v548, %v576
  %v617 = vadd.f32 %v549, %v576
  %v618 = vadd.f32 %v550, %v576
  %v619 = vadd.f32 %v551, %v576
  %v620 = vadd.f32 %v552, %v576
  %v621 = vadd.f32 %v553, %v576
  %v622 = vadd.f32 %v554, %v576
  %v623 = vadd.f32 %v555, %v576
  %v624 = vadd.f32 %v556, %v576
  %v625 = vadd.f32 %v557, %v576
  %v626 = vadd.f32 %v558, %v576
  %v627 = vadd.f32 %v559, %v576
  %v628 = vadd.f32 %v560, %v576
  %v629 = vadd.f32 %v561, %v576
  %v630 = vadd.f32 %v562, %v576
  %v631 = vadd.f32 %v563, %v576
  %v632 = vadd.f32 %v564, %v576
  %v633 = vadd.f32 %v565, %v576
  %v634 = vadd.f32 %v566, %v576
  %v635 = vadd.f32 %v567, %v576
  %v636 = vadd.f32 %v568, %v576
  %v637 = vadd.f32 %v569, %v576
  %v638 = vadd.f32 %v570, %v576
  %v639 = vadd.f32 %v571, %v576
  %v640 = vadd.f32 %v572, %v576
  %v641 = vadd.f32 %v573, %v576
  %vm642 = vcmp.ge.f32.partialorder %v578, 0.0
  %vm643 = vcmp.ge.f32.partialorder %v579, 0.0
  %vm644 = vcmp.ge.f32.partialorder %v580, 0.0
  %vm645 = vcmp.ge.f32.partialorder %v581, 0.0
  %vm646 = vcmp.ge.f32.partialorder %v582, 0.0
  %vm647 = vcmp.ge.f32.partialorder %v583, 0.0
  %vm648 = vcmp.ge.f32.partialorder %v584, 0.0
  %vm649 = vcmp.ge.f32.partialorder %v585, 0.0
  %vm650 = vcmp.ge.f32.partialorder %v586, 0.0
  %vm651 = vcmp.ge.f32.partialorder %v587, 0.0
  %vm652 = vcmp.ge.f32.partialorder %v588, 0.0
  %vm653 = vcmp.ge.f32.partialorder %v589, 0.0
  %vm654 = vcmp.ge.f32.partialorder %v590, 0.0
  %vm655 = vcmp.ge.f32.partialorder %v591, 0.0
  %vm656 = vcmp.ge.f32.partialorder %v592, 0.0
  %vm657 = vcmp.ge.f32.partialorder %v593, 0.0
  %vm658 = vcmp.ge.f32.partialorder %v594, 0.0
  %vm659 = vcmp.ge.f32.partialorder %v595, 0.0
  %vm660 = vcmp.ge.f32.partialorder %v596, 0.0
  %vm661 = vcmp.ge.f32.partialorder %v597, 0.0
  %vm662 = vcmp.ge.f32.partialorder %v598, 0.0
  %vm663 = vcmp.ge.f32.partialorder %v599, 0.0
  %vm664 = vcmp.ge.f32.partialorder %v600, 0.0
  %vm665 = vcmp.ge.f32.partialorder %v601, 0.0
  %vm666 = vcmp.ge.f32.partialorder %v602, 0.0
  %vm667 = vcmp.ge.f32.partialorder %v603, 0.0
  %vm668 = vcmp.ge.f32.partialorder %v604, 0.0
  %vm669 = vcmp.ge.f32.partialorder %v605, 0.0
  %vm670 = vcmp.ge.f32.partialorder %v606, 0.0
  %vm671 = vcmp.ge.f32.partialorder %v607, 0.0
  %vm672 = vcmp.ge.f32.partialorder %v608, 0.0
  %vm673 = vcmp.ge.f32.partialorder %v609, 0.0
  %vm674 = vcmp.ge.f32.partialorder %v610, 0.0
  %vm675 = vcmp.ge.f32.partialorder %v611, 0.0
  %vm676 = vcmp.ge.f32.partialorder %v612, 0.0
  %vm677 = vcmp.ge.f32.partialorder %v613, 0.0
  %vm678 = vcmp.ge.f32.partialorder %v614, 0.0
  %vm679 = vcmp.ge.f32.partialorder %v615, 0.0
  %vm680 = vcmp.ge.f32.partialorder %v616, 0.0
  %vm681 = vcmp.ge.f32.partialorder %v617, 0.0
  %vm682 = vcmp.ge.f32.partialorder %v618, 0.0
  %vm683 = vcmp.ge.f32.partialorder %v619, 0.0
  %vm684 = vcmp.ge.f32.partialorder %v620, 0.0
  %vm685 = vcmp.ge.f32.partialorder %v621, 0.0
  %vm686 = vcmp.ge.f32.partialorder %v622, 0.0
  %vm687 = vcmp.ge.f32.partialorder %v623, 0.0
  %vm688 = vcmp.ge.f32.partialorder %v624, 0.0
  %vm689 = vcmp.ge.f32.partialorder %v625, 0.0
  %vm690 = vcmp.ge.f32.partialorder %v626, 0.0
  %vm691 = vcmp.ge.f32.partialorder %v627, 0.0
  %vm692 = vcmp.ge.f32.partialorder %v628, 0.0
  %vm693 = vcmp.ge.f32.partialorder %v629, 0.0
  %vm694 = vcmp.ge.f32.partialorder %v630, 0.0
  %vm695 = vcmp.ge.f32.partialorder %v631, 0.0
  %vm696 = vcmp.ge.f32.partialorder %v632, 0.0
  %vm697 = vcmp.ge.f32.partialorder %v633, 0.0
  %vm698 = vcmp.ge.f32.partialorder %v634, 0.0
  %vm699 = vcmp.ge.f32.partialorder %v635, 0.0
  %vm700 = vcmp.ge.f32.partialorder %v636, 0.0
  %vm701 = vcmp.ge.f32.partialorder %v637, 0.0
  %vm702 = vcmp.ge.f32.partialorder %v638, 0.0
  %vm703 = vcmp.ge.f32.partialorder %v639, 0.0
  %vm704 = vcmp.ge.f32.partialorder %v640, 0.0
  %vm705 = vcmp.ge.f32.partialorder %v641, 0.0
  %v706 = vmul.f32 %v578, 0.2
  %v707 = vmul.f32 %v579, 0.2
  %v708 = vmul.f32 %v580, 0.2
  %v709 = vmul.f32 %v581, 0.2
  %v710 = vmul.f32 %v582, 0.2
  %v711 = vmul.f32 %v583, 0.2
  %v712 = vmul.f32 %v584, 0.2
  %v713 = vmul.f32 %v585, 0.2
  %v714 = vmul.f32 %v586, 0.2
  %v715 = vmul.f32 %v587, 0.2
  %v716 = vmul.f32 %v588, 0.2
  %v717 = vmul.f32 %v589, 0.2
  %v718 = vmul.f32 %v590, 0.2
  %v719 = vmul.f32 %v591, 0.2
  %v720 = vmul.f32 %v592, 0.2
  %v721 = vmul.f32 %v593, 0.2
  %v722 = vmul.f32 %v594, 0.2
  %v723 = vmul.f32 %v595, 0.2
  %v724 = vmul.f32 %v596, 0.2
  %v725 = vmul.f32 %v597, 0.2
  %v726 = vmul.f32 %v598, 0.2
  %v727 = vmul.f32 %v599, 0.2
  %v728 = vmul.f32 %v600, 0.2
  %v729 = vmul.f32 %v601, 0.2
  %v730 = vmul.f32 %v602, 0.2
  %v731 = vmul.f32 %v603, 0.2
  %v732 = vmul.f32 %v604, 0.2
  %v733 = vmul.f32 %v605, 0.2
  %v734 = vmul.f32 %v606, 0.2
  %v735 = vmul.f32 %v607, 0.2
  %v736 = vmul.f32 %v608, 0.2
  %v737 = vmul.f32 %v609, 0.2
  %v738 = vmul.f32 %v610, 0.2
  %v739 = vmul.f32 %v611, 0.2
  %v740 = vmul.f32 %v612, 0.2
  %v741 = vmul.f32 %v613, 0.2
  %v742 = vmul.f32 %v614, 0.2
  %v743 = vmul.f32 %v615, 0.2
  %v744 = vmul.f32 %v616, 0.2
  %v745 = vmul.f32 %v617, 0.2
  %v746 = vmul.f32 %v618, 0.2
  %v747 = vmul.f32 %v619, 0.2
  %v748 = vmul.f32 %v620, 0.2
  %v749 = vmul.f32 %v621, 0.2
  %v750 = vmul.f32 %v622, 0.2
  %v751 = vmul.f32 %v623, 0.2
  %v752 = vmul.f32 %v624, 0.2
  %v753 = vmul.f32 %v625, 0.2
  %v754 = vmul.f32 %v626, 0.2
  %v755 = vmul.f32 %v627, 0.2
  %v756 = vmul.f32 %v628, 0.2
  %v757 = vmul.f32 %v629, 0.2
  %v758 = vmul.f32 %v630, 0.2
  %v759 = vmul.f32 %v631, 0.2
  %v760 = vmul.f32 %v632, 0.2
  %v761 = vmul.f32 %v633, 0.2
  %v762 = vmul.f32 %v634, 0.2
  %v763 = vmul.f32 %v635, 0.2
  %v764 = vmul.f32 %v636, 0.2
  %v765 = vmul.f32 %v637, 0.2
  %v766 = vmul.f32 %v638, 0.2
  %v767 = vmul.f32 %v639, 0.2
  %v768 = vmul.f32 %v640, 0.2
  %v769 = vmul.f32 %v641, 0.2
  %v770 = vsel %vm642, %v578, %v706
  %v771 = vsel %vm643, %v579, %v707
  %v772 = vsel %vm644, %v580, %v708
  %v773 = vsel %vm645, %v581, %v709
  %v774 = vsel %vm646, %v582, %v710
  %v775 = vsel %vm647, %v583, %v711
  %v776 = vsel %vm648, %v584, %v712
  %v777 = vsel %vm649, %v585, %v713
  %v778 = vsel %vm650, %v586, %v714
  %v779 = vsel %vm651, %v587, %v715
  %v780 = vsel %vm652, %v588, %v716
  %v781 = vsel %vm653, %v589, %v717
  %v782 = vsel %vm654, %v590, %v718
  %v783 = vsel %vm655, %v591, %v719
  %v784 = vsel %vm656, %v592, %v720
  %v785 = vsel %vm657, %v593, %v721
  %v786 = vsel %vm658, %v594, %v722
  %v787 = vsel %vm659, %v595, %v723
  %v788 = vsel %vm660, %v596, %v724
  %v789 = vsel %vm661, %v597, %v725
  %v790 = vsel %vm662, %v598, %v726
  %v791 = vsel %vm663, %v599, %v727
  %v792 = vsel %vm664, %v600, %v728
  %v793 = vsel %vm665, %v601, %v729
  %v794 = vsel %vm666, %v602, %v730
  %v795 = vsel %vm667, %v603, %v731
  %v796 = vsel %vm668, %v604, %v732
  %v797 = vsel %vm669, %v605, %v733
  %v798 = vsel %vm670, %v606, %v734
  %v799 = vsel %vm671, %v607, %v735
  %v800 = vsel %vm672, %v608, %v736
  %v801 = vsel %vm673, %v609, %v737
  %v802 = vsel %vm674, %v610, %v738
  %v803 = vsel %vm675, %v611, %v739
  %v804 = vsel %vm676, %v612, %v740
  %v805 = vsel %vm677, %v613, %v741
  %v806 = vsel %vm678, %v614, %v742
  %v807 = vsel %vm679, %v615, %v743
  %v808 = vsel %vm680, %v616, %v744
  %v809 = vsel %vm681, %v617, %v745
  %v810 = vsel %vm682, %v618, %v746
  %v811 = vsel %vm683, %v619, %v747
  %v812 = vsel %vm684, %v620, %v748
  %v813 = vsel %vm685, %v621, %v749
  %v814 = vsel %vm686, %v622, %v750
  %v815 = vsel %vm687, %v623, %v751
  %v816 = vsel %vm688, %v624, %v752
  %v817 = vsel %vm689, %v625, %v753
  %v818 = vsel %vm690, %v626, %v754
  %v819 = vsel %vm691, %v627, %v755
  %v820 = vsel %vm692, %v628, %v756
  %v821 = vsel %vm693, %v629, %v757
  %v822 = vsel %vm694, %v630, %v758
  %v823 = vsel %vm695, %v631, %v759
  %v824 = vsel %vm696, %v632, %v760
  %v825 = vsel %vm697, %v633, %v761
  %v826 = vsel %vm698, %v634, %v762
  %v827 = vsel %vm699, %v635, %v763
  %v828 = vsel %vm700, %v636, %v764
  %v829 = vsel %vm701, %v637, %v765
  %v830 = vsel %vm702, %v638, %v766
  %v831 = vsel %vm703, %v639, %v767
  %v832 = vsel %vm704, %v640, %v768
  %v833 = vsel %vm705, %v641, %v769
  %834 = vst [vmem:[%s4] sm:$0xff] %v770
  %835 = vst [vmem:[%s4 + $0x8] sm:$0xff] %v771
  %836 = vst [vmem:[%s4 + $0x10] sm:$0xff] %v772
  %837 = vst [vmem:[%s4 + $0x18] sm:$0xff] %v773
  %838 = vst [vmem:[%s4 + $0x20] sm:$0xff] %v774
  %839 = vst [vmem:[%s4 + $0x28] sm:$0xff] %v775
  %840 = vst [vmem:[%s4 + $0x30] sm:$0xff] %v776
  %841 = vst [vmem:[%s4 + $0x38] sm:$0xff] %v777
  %842 = vst [vmem:[%s4 + $0x40] sm:$0xff] %v778
  %843 = vst [vmem:[%s4 + $0x48] sm:$0xff] %v779
  %844 = vst [vmem:[%s4 + $0x50] sm:$0xff] %v780
  %845 = vst [vmem:[%s4 + $0x58] sm:$0xff] %v781
  %846 = vst [vmem:[%s4 + $0x60] sm:$0xff] %v782
  %847 = vst [vmem:[%s4 + $0x68] sm:$0xff] %v783
  %848 = vst [vmem:[%s4 + $0x70] sm:$0xff] %v784
  %849 = vst [vmem:[%s4 + $0x78] sm:$0xff] %v785
  %850 = vst [vmem:[%s4 + $0x80] sm:$0xff] %v786
  %851 = vst [vmem:[%s4 + $0x88] sm:$0xff] %v787
  %852 = vst [vmem:[%s4 + $0x90] sm:$0xff] %v788
  %853 = vst [vmem:[%s4 + $0x98] sm:$0xff] %v789
  %854 = vst [vmem:[%s4 + $0xa0] sm:$0xff] %v790
  %855 = vst [vmem:[%s4 + $0xa8] sm:$0xff] %v791
  %856 = vst [vmem:[%s4 + $0xb0] sm:$0xff] %v792
  %857 = vst [vmem:[%s4 + $0xb8] sm:$0xff] %v793
  %858 = vst [vmem:[%s4 + $0xc0] sm:$0xff] %v794
  %859 = vst [vmem:[%s4 + $0xc8] sm:$0xff] %v795
  %860 = vst [vmem:[%s4 + $0xd0] sm:$0xff] %v796
  %861 = vst [vmem:[%s4 + $0xd8] sm:$0xff] %v797
  %862 = vst [vmem:[%s4 + $0xe0] sm:$0xff] %v798
  %863 = vst [vmem:[%s4 + $0xe8] sm:$0xff] %v799
  %864 = vst [vmem:[%s4 + $0xf0] sm:$0xff] %v800
  %865 = vst [vmem:[%s4 + $0xf8] sm:$0xff] %v801
  %866 = vst [vmem:[%s4 + $0x100] sm:$0xff] %v802
  %867 = vst [vmem:[%s4 + $0x108] sm:$0xff] %v803
  %868 = vst [vmem:[%s4 + $0x110] sm:$0xff] %v804
  %869 = vst [vmem:[%s4 + $0x118] sm:$0xff] %v805
  %870 = vst [vmem:[%s4 + $0x120] sm:$0xff] %v806
  %871 = vst [vmem:[%s4 + $0x128] sm:$0xff] %v807
  %872 = vst [vmem:[%s4 + $0x130] sm:$0xff] %v808
  %873 = vst [vmem:[%s4 + $0x138] sm:$0xff] %v809
  %874 = vst [vmem:[%s4 + $0x140] sm:$0xff] %v810
  %875 = vst [vmem:[%s4 + $0x148] sm:$0xff] %v811
  %876 = vst [vmem:[%s4 + $0x150] sm:$0xff] %v812
  %877 = vst [vmem:[%s4 + $0x158] sm:$0xff] %v813
  %878 = vst [vmem:[%s4 + $0x160] sm:$0xff] %v814
  %879 = vst [vmem:[%s4 + $0x168] sm:$0xff] %v815
  %880 = vst [vmem:[%s4 + $0x170] sm:$0xff] %v816
  %881 = vst [vmem:[%s4 + $0x178] sm:$0xff] %v817
  %882 = vst [vmem:[%s4 + $0x180] sm:$0xff] %v818
  %883 = vst [vmem:[%s4 + $0x188] sm:$0xff] %v819
  %884 = vst [vmem:[%s4 + $0x190] sm:$0xff] %v820
  %885 = vst [vmem:[%s4 + $0x198] sm:$0xff] %v821
  %886 = vst [vmem:[%s4 + $0x1a0] sm:$0xff] %v822
  %887 = vst [vmem:[%s4 + $0x1a8] sm:$0xff] %v823
  %888 = vst [vmem:[%s4 + $0x1b0] sm:$0xff] %v824
  %889 = vst [vmem:[%s4 + $0x1b8] sm:$0xff] %v825
  %890 = vst [vmem:[%s4 + $0x1c0] sm:$0xff] %v826
  %891 = vst [vmem:[%s4 + $0x1c8] sm:$0xff] %v827
  %892 = vst [vmem:[%s4 + $0x1d0] sm:$0xff] %v828
  %893 = vst [vmem:[%s4 + $0x1d8] sm:$0xff] %v829
  %894 = vst [vmem:[%s4 + $0x1e0] sm:$0xff] %v830
  %895 = vst [vmem:[%s4 + $0x1e8] sm:$0xff] %v831
  %896 = vst [vmem:[%s4 + $0x1f0] sm:$0xff] %v832
  %897 = vst [vmem:[%s4 + $0x1f8] sm:$0xff] %v833
  // Predicated region
  $region18: #{basic_block_forward.3} parent=0 // pred_check
    _
  $region19: #{basic_block_forward.3} parent=0 // pred_check_branch
    %899 = sbr.rel (0) target = $region21
  $region20: #{basic_block_forward.3} parent=0 // pred_region
    _
  $region21: #{basic_block_forward.3} parent=0 // pred_fallthru
    _
  // Predicated region
  $region22: #{basic_block_forward.3} parent=0 // pred_check
    _
  $region23: #{basic_block_forward.3} parent=0 // pred_check_branch
    %901 = sbr.rel (0) target = $region25
  $region24: #{basic_block_forward.3} parent=0 // pred_region
    _
  $region25: #{basic_block_forward.3} parent=0 // pred_fallthru
    _

</llo_original>
